<compile_context>
chip_gen: v7x
topology: tpu7x:2x2x1
jax: 0.10.0
libtpu: 0.0.40
codegen_flags: <defaults>
</compile_context>

<pallas_src>
import numpy as np
import jax
import jax.numpy as jnp
from jax.experimental import pallas as pl
from jax.experimental.pallas import tpu as pltpu

# ---- problem sizes (small, demo) -------------------------------------------
B = 2
D_COV, D_INP, D_OUT = 4, 4, 4
N_INP, N_OUT = 16, 8
N_ITERS = 3
EPS = 1e-5
CH = D_COV * D_OUT            # 16  flattened (c, h)
L = CH * N_OUT                # 128 flattened (c, h, j) -> one full lane row

# Whole batch in one grid step (B is tiny).  On v7x use B // 2 (>= 1) so both
# TensorCores get work; on v5e/v6e (1 TC) keep the single step.
BATCH_BLOCK = B


def _log_sigmoid(x):
    # log(sigmoid(x)) = min(x, 0) - log(1 + exp(-|x|))
    return jnp.minimum(x, 0.0) - jnp.log(1.0 + jnp.exp(-jnp.abs(x)))


def _segment_sum_to_nout(x, n_out):
    """Sum a [..., L] array over the CH lanes of each output capsule.

    Lane layout is lane = ch*n_out + j, so halving the lane axis and adding the
    two halves keeps j fixed and folds over ch.  Pure f32 adds (exact).
    """
    w = x.shape[-1]
    while w > n_out:
        w //= 2
        x = x[..., :w] + x[..., w:]
    return x


def _replicate_to_lanes(x, width):
    """Replicate a [..., n_out] array to [..., width] (lane = ch*n_out + j)."""
    while x.shape[-1] < width:
        x = jnp.concatenate([x, x], axis=-1)
    return x


def routing_kernel(a_ref, mu_ref, w_ref, b_ref, bu_ref, bi_ref,
                   a_out_ref, mu_out_ref, sig2_out_ref):
    # a_ref  : (BB, N_INP, 1)          input scores
    # mu_ref : (D_INP, BB, N_INP, L)   mu_ref[d, b, i, lane] = mu_inp[b, i, c, d]
    # w_ref  : (D_INP, N_INP, L)       w_ref[d, i, lane]     = W[i, j, d, h]
    # b_ref  : (N_INP, L)              b_ref[i, lane]        = B[i, j, c, h]
    # bu_ref : (N_INP, N_OUT)          beta_use
    # bi_ref : (N_INP, N_OUT)          beta_ign
    # outputs: a_out (BB, N_OUT), mu_out / sig2_out (BB, L) lane-dense slabs
    bb, n_inp, _ = a_ref.shape
    n_out = bu_ref.shape[-1]
    width = b_ref.shape[-1]

    f_a = 1.0 / (1.0 + jnp.exp(-a_ref[...]))            # sigmoid(a_inp) [BB, N_INP, 1]

    # Votes V[b, i, lane] = sum_d W[i,j,d,h] * mu[b,i,c,d] + B[i,j,c,h]
    V = mu_ref[0] * w_ref[0][None]
    for d in range(1, D_INP):                           # unrolled, dense FMAs
        V = V + mu_ref[d] * w_ref[d][None]
    V = V + b_ref[...][None]                            # [BB, N_INP, L]

    beta_use = bu_ref[...][None]                        # [1, N_INP, N_OUT]
    beta_ign = bi_ref[...][None]

    a_out = mu_out = sig2_out = Vm2 = None
    for it in range(N_ITERS):                           # unrolled routing iterations
        if it == 0:
            # R is the uniform constant 1/n_out: fold it straight into D_use.
            D_use = jnp.broadcast_to(f_a * (1.0 / n_out), (bb, n_inp, n_out))
        else:
            # p_model == 'skm': log_p = log_softmax_j(-sum_{c,h} (V - mu_out)^2)
            s = -_segment_sum_to_nout(Vm2, n_out)                        # [BB, N_INP, N_OUT]
            m = jnp.max(s, axis=-1, keepdims=True)
            log_p = (s - m) - jnp.log(jnp.sum(jnp.exp(s - m), axis=-1, keepdims=True))
            logits = _log_sigmoid(a_out)[:, None, :] + log_p
            mm = jnp.max(logits, axis=-1, keepdims=True)
            e = jnp.exp(logits - mm)
            R = e / jnp.sum(e, axis=-1, keepdims=True)                   # softmax over j
            D_use = f_a * R                                              # [BB, N_INP, N_OUT]
        D_ign = f_a - D_use
        a_out = (jnp.sum(beta_use * D_use, axis=1)
                 - jnp.sum(beta_ign * D_ign, axis=1))                    # [BB, N_OUT]

        inv_den = pl.reciprocal(jnp.sum(D_use, axis=1) + EPS, approx=False)  # [BB, N_OUT]
        inv_den_l = _replicate_to_lanes(inv_den, width)                  # [BB, L]
        D_use_l = _replicate_to_lanes(D_use, width)                      # [BB, N_INP, L]
        mu_out = jnp.sum(D_use_l * V, axis=1) * inv_den_l                # [BB, L]
        Vm2 = (V - mu_out[:, None, :]) ** 2                              # [BB, N_INP, L]
        sig2_out = jnp.sum(D_use_l * Vm2, axis=1) * inv_den_l + EPS      # [BB, L]

    a_out_ref[...] = a_out
    mu_out_ref[...] = mu_out
    sig2_out_ref[...] = sig2_out


def prepare_routing_params(W, Bparam, beta_use, beta_ign):
    """One-time, parameter-only layout work (hoisted out of the per-call path)."""
    W = W.astype(jnp.float32)
    # W_tiled[d, i, (c*D_OUT + h)*N_OUT + j] = W[i, j, d, h]   (replicated over c)
    W_t = jnp.transpose(W, (2, 0, 3, 1))                        # [D_INP, N_INP, D_OUT, N_OUT]
    W_tiled = jnp.broadcast_to(
        W_t[:, :, None, :, :],
        (D_INP, N_INP, D_COV, D_OUT, N_OUT)).reshape(D_INP, N_INP, L)
    # B_flat[i, (c*D_OUT + h)*N_OUT + j] = B[i, j, c, h]
    B_flat = jnp.transpose(Bparam.astype(jnp.float32), (0, 2, 3, 1)).reshape(N_INP, L)
    return (W_tiled, B_flat,
            beta_use.astype(jnp.float32), beta_ign.astype(jnp.float32))


@jax.jit
def routing_forward(params, a_inp, mu_inp):
    """a_inp: [B, N_INP], mu_inp: [B, N_INP, D_COV, D_INP]."""
    W_tiled, B_flat, bu, bi = params

    a_in = a_inp.astype(jnp.float32)[..., None]                 # [B, N_INP, 1]
    # mu_exp[d, b, i, (c*D_OUT + h)*N_OUT + j] = mu_inp[b, i, c, d]
    mu_t = jnp.transpose(mu_inp.astype(jnp.float32), (3, 0, 1, 2))  # [D_INP, B, N_INP, D_COV]
    mu_exp = jnp.broadcast_to(
        mu_t[:, :, :, :, None, None],
        (D_INP, B, N_INP, D_COV, D_OUT, N_OUT)).reshape(D_INP, B, N_INP, L)

    BB = BATCH_BLOCK
    grid = (B // BB,)

    grid_spec = pltpu.PrefetchScalarGridSpec(
        num_scalar_prefetch=0,
        grid=grid,
        in_specs=[
            pl.BlockSpec((BB, N_INP, 1), lambda g: (g, 0, 0)),             # a_in
            pl.BlockSpec((D_INP, BB, N_INP, L), lambda g: (0, g, 0, 0)),   # mu_exp
            pl.BlockSpec((D_INP, N_INP, L), lambda g: (0, 0, 0)),          # W_tiled
            pl.BlockSpec((N_INP, L), lambda g: (0, 0)),                    # B_flat
            pl.BlockSpec((N_INP, N_OUT), lambda g: (0, 0)),                # beta_use
            pl.BlockSpec((N_INP, N_OUT), lambda g: (0, 0)),                # beta_ign
        ],
        out_specs=(
            pl.BlockSpec((BB, N_OUT), lambda g: (g, 0)),                   # a_out
            pl.BlockSpec((BB, L), lambda g: (g, 0)),                       # mu_out (lane-dense)
            pl.BlockSpec((BB, L), lambda g: (g, 0)),                       # sig2_out (lane-dense)
        ),
    )

    a_out, mu_flat, sig2_flat = pl.pallas_call(
        routing_kernel,
        out_shape=(
            jax.ShapeDtypeStruct((B, N_OUT), jnp.float32),
            jax.ShapeDtypeStruct((B, L), jnp.float32),
            jax.ShapeDtypeStruct((B, L), jnp.float32),
        ),
        grid_spec=grid_spec,
        compiler_params=pltpu.CompilerParams(dimension_semantics=("parallel",)),
    )(a_in, mu_exp, W_tiled, B_flat, bu, bi)

    # un-flatten lanes: lane = (c*D_OUT + h)*N_OUT + j
    mu_out = jnp.transpose(mu_flat.reshape(B, D_COV, D_OUT, N_OUT), (0, 3, 1, 2))
    sig2_out = jnp.transpose(sig2_flat.reshape(B, D_COV, D_OUT, N_OUT), (0, 3, 1, 2))
    return a_out, mu_out, sig2_out


# ---- pure-JAX reference (direct transcription of the PyTorch forward) -------
def routing_ref(a_inp, mu_inp, W, Bparam, beta_use, beta_ign):
    n_out = W.shape[1]
    V = jnp.einsum('ijdh,bicd->bijch', W, mu_inp,
                   precision=jax.lax.Precision.HIGHEST) + Bparam
    f_a = jax.nn.sigmoid(a_inp)[..., None]
    a_out = mu_out = sig2_out = Vm2 = None
    for it in range(N_ITERS):
        if it == 0:
            R = jnp.full(V.shape[:-2], 1.0 / n_out, dtype=V.dtype)
        else:
            log_p = jax.nn.log_softmax(-Vm2.sum((-2, -1)), axis=-1)
            R = jax.nn.softmax(jax.nn.log_sigmoid(a_out)[..., None, :] + log_p, axis=-1)
        D_use = f_a * R
        D_ign = f_a - D_use
        a_out = (beta_use * D_use).sum(-2) - (beta_ign * D_ign).sum(-2)
        over = 1.0 / (D_use.sum(-2) + EPS)                              # [B, n_out]
        mu_out = (D_use[..., None, None] * V).sum(1) * over[..., None, None]
        Vm2 = (V - mu_out[:, None]) ** 2
        sig2_out = (D_use[..., None, None] * Vm2).sum(1) * over[..., None, None] + EPS
    return a_out, mu_out, sig2_out


if __name__ == "__main__":
    key = jax.random.PRNGKey(0)
    k1, k2, k3, k4, k5, k6 = jax.random.split(key, 6)

    # Parameters (nn.Parameter shapes from __init__).  The module inits B and
    # beta_* to zeros; use small random values here to exercise the full math.
    W = jax.random.normal(k1, (N_INP, N_OUT, D_INP, D_OUT), jnp.float32) / D_INP
    Bparam = 0.1 * jax.random.normal(k4, (N_INP, N_OUT, D_COV, D_OUT), jnp.float32)
    beta_use = 0.1 * jax.random.normal(k5, (N_INP, N_OUT), jnp.float32)
    beta_ign = 0.1 * jax.random.normal(k6, (N_INP, N_OUT), jnp.float32)  # single_beta=False

    # inputs
    a_inp = jax.random.normal(k2, (B, N_INP), jnp.float32)
    mu_inp = jax.random.normal(k3, (B, N_INP, D_COV, D_INP), jnp.float32)

    params = prepare_routing_params(W, Bparam, beta_use, beta_ign)
    a_out, mu_out, sig2_out = routing_forward(params, a_inp, mu_inp)
    jax.block_until_ready((a_out, mu_out, sig2_out))

    a_r, mu_r, sig2_r = routing_ref(a_inp, mu_inp, W, Bparam, beta_use, beta_ign)
    np.testing.assert_allclose(np.asarray(a_out), np.asarray(a_r), atol=1e-4, rtol=1e-4)
    np.testing.assert_allclose(np.asarray(mu_out), np.asarray(mu_r), atol=1e-4, rtol=1e-4)
    np.testing.assert_allclose(np.asarray(sig2_out), np.asarray(sig2_r), atol=1e-4, rtol=1e-4)

    print("KERNEL_OK")
</pallas_src>

<mosaic_0001>
module attributes {stable_mosaic.version = 11 : i64} {
  func.func @routing_kernel(%arg0: i32, %arg1: memref<2x16x1xf32, #tpu.memory_space<vmem>>, %arg2: memref<4x2x16x128xf32, #tpu.memory_space<vmem>>, %arg3: memref<4x16x128xf32, #tpu.memory_space<vmem>>, %arg4: memref<16x128xf32, #tpu.memory_space<vmem>>, %arg5: memref<16x8xf32, #tpu.memory_space<vmem>>, %arg6: memref<16x8xf32, #tpu.memory_space<vmem>>, %arg7: memref<2x8xf32, #tpu.memory_space<vmem>>, %arg8: memref<2x128xf32, #tpu.memory_space<vmem>>, %arg9: memref<2x128xf32, #tpu.memory_space<vmem>>) attributes {dimension_semantics = [#tpu.dimension_semantics<parallel>], iteration_bounds = array<i64: 1>, scalar_prefetch = 0 : i64, scratch_operands = 0 : i64, tpu.core_type = #tpu.core_type<tc>, window_params = [{transform_indices = @transform_0, window_bounds = array<i64: 2, 16, 1>}, {transform_indices = @transform_1, window_bounds = array<i64: 4, 2, 16, 128>}, {pipeline_mode = #tpu.pipeline_mode<synchronous>, transform_indices = @transform_2, window_bounds = array<i64: 4, 16, 128>}, {pipeline_mode = #tpu.pipeline_mode<synchronous>, transform_indices = @transform_3, window_bounds = array<i64: 16, 128>}, {pipeline_mode = #tpu.pipeline_mode<synchronous>, transform_indices = @transform_4, window_bounds = array<i64: 16, 8>}, {pipeline_mode = #tpu.pipeline_mode<synchronous>, transform_indices = @transform_5, window_bounds = array<i64: 16, 8>}, {transform_indices = @transform_6, window_bounds = array<i64: 2, 8>}, {transform_indices = @transform_7, window_bounds = array<i64: 2, 128>}, {transform_indices = @transform_8, window_bounds = array<i64: 2, 128>}]} {
    %c0 = arith.constant 0 : index
    %c0_0 = arith.constant 0 : index
    %c0_1 = arith.constant 0 : index
    %0 = vector.load %arg1[%c0, %c0_0, %c0_1] : memref<2x16x1xf32, #tpu.memory_space<vmem>>, vector<2x16x1xf32>
    %cst = arith.constant 0.000000e+00 : f32
    %1 = vector.broadcast %cst : f32 to vector<2x16x1xf32>
    %2 = arith.subf %1, %0 : vector<2x16x1xf32>
    %3 = math.exp %2 : vector<2x16x1xf32>
    %cst_2 = arith.constant 1.000000e+00 : f32
    %4 = vector.broadcast %cst_2 : f32 to vector<2x16x1xf32>
    %5 = arith.addf %4, %3 : vector<2x16x1xf32>
    %cst_3 = arith.constant 1.000000e+00 : f32
    %6 = vector.broadcast %cst_3 : f32 to vector<2x16x1xf32>
    %7 = arith.divf %6, %5 : vector<2x16x1xf32>
    %c0_4 = arith.constant 0 : index
    %c0_5 = arith.constant 0 : index
    %c0_6 = arith.constant 0 : index
    %c0_7 = arith.constant 0 : index
    %8 = vector.load %arg2[%c0_4, %c0_5, %c0_6, %c0_7] : memref<4x2x16x128xf32, #tpu.memory_space<vmem>>, vector<1x2x16x128xf32>
    %9 = vector.shape_cast %8 : vector<1x2x16x128xf32> to vector<2x16x128xf32>
    %c0_8 = arith.constant 0 : index
    %c0_9 = arith.constant 0 : index
    %c0_10 = arith.constant 0 : index
    %10 = vector.load %arg3[%c0_8, %c0_9, %c0_10] : memref<4x16x128xf32, #tpu.memory_space<vmem>>, vector<1x16x128xf32>
    %11 = vector.shape_cast %10 : vector<1x16x128xf32> to vector<16x128xf32>
    %12 = vector.shape_cast %11 : vector<16x128xf32> to vector<1x16x128xf32>
    %13 = vector.broadcast %12 : vector<1x16x128xf32> to vector<2x16x128xf32>
    %14 = arith.mulf %9, %13 : vector<2x16x128xf32>
    %c1 = arith.constant 1 : index
    %c0_11 = arith.constant 0 : index
    %c0_12 = arith.constant 0 : index
    %c0_13 = arith.constant 0 : index
    %15 = vector.load %arg2[%c1, %c0_11, %c0_12, %c0_13] : memref<4x2x16x128xf32, #tpu.memory_space<vmem>>, vector<1x2x16x128xf32>
    %16 = vector.shape_cast %15 : vector<1x2x16x128xf32> to vector<2x16x128xf32>
    %c1_14 = arith.constant 1 : index
    %c0_15 = arith.constant 0 : index
    %c0_16 = arith.constant 0 : index
    %17 = vector.load %arg3[%c1_14, %c0_15, %c0_16] : memref<4x16x128xf32, #tpu.memory_space<vmem>>, vector<1x16x128xf32>
    %18 = vector.shape_cast %17 : vector<1x16x128xf32> to vector<16x128xf32>
    %19 = vector.shape_cast %18 : vector<16x128xf32> to vector<1x16x128xf32>
    %20 = vector.broadcast %19 : vector<1x16x128xf32> to vector<2x16x128xf32>
    %21 = arith.mulf %16, %20 : vector<2x16x128xf32>
    %22 = arith.addf %14, %21 : vector<2x16x128xf32>
    %c2 = arith.constant 2 : index
    %c0_17 = arith.constant 0 : index
    %c0_18 = arith.constant 0 : index
    %c0_19 = arith.constant 0 : index
    %23 = vector.load %arg2[%c2, %c0_17, %c0_18, %c0_19] : memref<4x2x16x128xf32, #tpu.memory_space<vmem>>, vector<1x2x16x128xf32>
    %24 = vector.shape_cast %23 : vector<1x2x16x128xf32> to vector<2x16x128xf32>
    %c2_20 = arith.constant 2 : index
    %c0_21 = arith.constant 0 : index
    %c0_22 = arith.constant 0 : index
    %25 = vector.load %arg3[%c2_20, %c0_21, %c0_22] : memref<4x16x128xf32, #tpu.memory_space<vmem>>, vector<1x16x128xf32>
    %26 = vector.shape_cast %25 : vector<1x16x128xf32> to vector<16x128xf32>
    %27 = vector.shape_cast %26 : vector<16x128xf32> to vector<1x16x128xf32>
    %28 = vector.broadcast %27 : vector<1x16x128xf32> to vector<2x16x128xf32>
    %29 = arith.mulf %24, %28 : vector<2x16x128xf32>
    %30 = arith.addf %22, %29 : vector<2x16x128xf32>
    %c3 = arith.constant 3 : index
    %c0_23 = arith.constant 0 : index
    %c0_24 = arith.constant 0 : index
    %c0_25 = arith.constant 0 : index
    %31 = vector.load %arg2[%c3, %c0_23, %c0_24, %c0_25] : memref<4x2x16x128xf32, #tpu.memory_space<vmem>>, vector<1x2x16x128xf32>
    %32 = vector.shape_cast %31 : vector<1x2x16x128xf32> to vector<2x16x128xf32>
    %c3_26 = arith.constant 3 : index
    %c0_27 = arith.constant 0 : index
    %c0_28 = arith.constant 0 : index
    %33 = vector.load %arg3[%c3_26, %c0_27, %c0_28] : memref<4x16x128xf32, #tpu.memory_space<vmem>>, vector<1x16x128xf32>
    %34 = vector.shape_cast %33 : vector<1x16x128xf32> to vector<16x128xf32>
    %35 = vector.shape_cast %34 : vector<16x128xf32> to vector<1x16x128xf32>
    %36 = vector.broadcast %35 : vector<1x16x128xf32> to vector<2x16x128xf32>
    %37 = arith.mulf %32, %36 : vector<2x16x128xf32>
    %38 = arith.addf %30, %37 : vector<2x16x128xf32>
    %c0_29 = arith.constant 0 : index
    %c0_30 = arith.constant 0 : index
    %39 = vector.load %arg4[%c0_29, %c0_30] : memref<16x128xf32, #tpu.memory_space<vmem>>, vector<16x128xf32>
    %40 = vector.shape_cast %39 : vector<16x128xf32> to vector<1x16x128xf32>
    %41 = vector.broadcast %40 : vector<1x16x128xf32> to vector<2x16x128xf32>
    %42 = arith.addf %38, %41 : vector<2x16x128xf32>
    %c0_31 = arith.constant 0 : index
    %c0_32 = arith.constant 0 : index
    %43 = vector.load %arg5[%c0_31, %c0_32] : memref<16x8xf32, #tpu.memory_space<vmem>>, vector<16x8xf32>
    %44 = vector.shape_cast %43 : vector<16x8xf32> to vector<1x16x8xf32>
    %c0_33 = arith.constant 0 : index
    %c0_34 = arith.constant 0 : index
    %45 = vector.load %arg6[%c0_33, %c0_34] : memref<16x8xf32, #tpu.memory_space<vmem>>, vector<16x8xf32>
    %46 = vector.shape_cast %45 : vector<16x8xf32> to vector<1x16x8xf32>
    %cst_35 = arith.constant 1.250000e-01 : f32
    %47 = vector.broadcast %cst_35 : f32 to vector<2x16x1xf32>
    %48 = arith.mulf %7, %47 : vector<2x16x1xf32>
    %49 = vector.shape_cast %48 : vector<2x16x1xf32> to vector<2x16x1xf32>
    %50 = vector.broadcast %49 : vector<2x16x1xf32> to vector<2x16x8xf32>
    %51 = vector.broadcast %7 : vector<2x16x1xf32> to vector<2x16x8xf32>
    %52 = arith.subf %51, %50 : vector<2x16x8xf32>
    %53 = vector.broadcast %44 : vector<1x16x8xf32> to vector<2x16x8xf32>
    %54 = arith.mulf %53, %50 : vector<2x16x8xf32>
    %cst_36 = arith.constant dense<0.000000e+00> : vector<2x8xf32>
    %55 = vector.multi_reduction <add>, %54, %cst_36 [1] : vector<2x16x8xf32> to vector<2x8xf32>
    %56 = vector.broadcast %46 : vector<1x16x8xf32> to vector<2x16x8xf32>
    %57 = arith.mulf %56, %52 : vector<2x16x8xf32>
    %cst_37 = arith.constant dense<0.000000e+00> : vector<2x8xf32>
    %58 = vector.multi_reduction <add>, %57, %cst_37 [1] : vector<2x16x8xf32> to vector<2x8xf32>
    %59 = arith.subf %55, %58 : vector<2x8xf32>
    %cst_38 = arith.constant dense<0.000000e+00> : vector<2x8xf32>
    %60 = vector.multi_reduction <add>, %50, %cst_38 [1] : vector<2x16x8xf32> to vector<2x8xf32>
    %cst_39 = arith.constant 9.99999974E-6 : f32
    %61 = vector.broadcast %cst_39 : f32 to vector<2x8xf32>
    %62 = arith.addf %60, %61 : vector<2x8xf32>
    %63 = tpu.reciprocal %62 : vector<2x8xf32> -> vector<2x8xf32>
    %64 = tpu.concatenate %63, %63 in 1 : vector<2x8xf32>, vector<2x8xf32> -> vector<2x16xf32>
    %65 = tpu.concatenate %64, %64 in 1 : vector<2x16xf32>, vector<2x16xf32> -> vector<2x32xf32>
    %66 = tpu.concatenate %65, %65 in 1 : vector<2x32xf32>, vector<2x32xf32> -> vector<2x64xf32>
    %67 = tpu.concatenate %66, %66 in 1 : vector<2x64xf32>, vector<2x64xf32> -> vector<2x128xf32>
    %68 = tpu.concatenate %50, %50 in 2 : vector<2x16x8xf32>, vector<2x16x8xf32> -> vector<2x16x16xf32>
    %69 = tpu.concatenate %68, %68 in 2 : vector<2x16x16xf32>, vector<2x16x16xf32> -> vector<2x16x32xf32>
    %70 = tpu.concatenate %69, %69 in 2 : vector<2x16x32xf32>, vector<2x16x32xf32> -> vector<2x16x64xf32>
    %71 = tpu.concatenate %70, %70 in 2 : vector<2x16x64xf32>, vector<2x16x64xf32> -> vector<2x16x128xf32>
    %72 = arith.mulf %71, %42 : vector<2x16x128xf32>
    %cst_40 = arith.constant dense<0.000000e+00> : vector<2x128xf32>
    %73 = vector.multi_reduction <add>, %72, %cst_40 [1] : vector<2x16x128xf32> to vector<2x128xf32>
    %74 = arith.mulf %73, %67 : vector<2x128xf32>
    %75 = vector.shape_cast %74 : vector<2x128xf32> to vector<2x1x128xf32>
    %76 = vector.broadcast %75 : vector<2x1x128xf32> to vector<2x16x128xf32>
    %77 = arith.subf %42, %76 : vector<2x16x128xf32>
    %78 = arith.mulf %77, %77 : vector<2x16x128xf32>
    %79 = vector.extract_strided_slice %78 {offsets = [0, 0, 0], sizes = [2, 16, 64], strides = [1, 1, 1]} : vector<2x16x128xf32> to vector<2x16x64xf32>
    %80 = vector.extract_strided_slice %78 {offsets = [0, 0, 64], sizes = [2, 16, 64], strides = [1, 1, 1]} : vector<2x16x128xf32> to vector<2x16x64xf32>
    %81 = arith.addf %79, %80 : vector<2x16x64xf32>
    %82 = vector.extract_strided_slice %81 {offsets = [0, 0, 0], sizes = [2, 16, 32], strides = [1, 1, 1]} : vector<2x16x64xf32> to vector<2x16x32xf32>
    %83 = vector.extract_strided_slice %81 {offsets = [0, 0, 32], sizes = [2, 16, 32], strides = [1, 1, 1]} : vector<2x16x64xf32> to vector<2x16x32xf32>
    %84 = arith.addf %82, %83 : vector<2x16x32xf32>
    %85 = vector.extract_strided_slice %84 {offsets = [0, 0, 0], sizes = [2, 16, 16], strides = [1, 1, 1]} : vector<2x16x32xf32> to vector<2x16x16xf32>
    %86 = vector.extract_strided_slice %84 {offsets = [0, 0, 16], sizes = [2, 16, 16], strides = [1, 1, 1]} : vector<2x16x32xf32> to vector<2x16x16xf32>
    %87 = arith.addf %85, %86 : vector<2x16x16xf32>
    %88 = vector.extract_strided_slice %87 {offsets = [0, 0, 0], sizes = [2, 16, 8], strides = [1, 1, 1]} : vector<2x16x16xf32> to vector<2x16x8xf32>
    %89 = vector.extract_strided_slice %87 {offsets = [0, 0, 8], sizes = [2, 16, 8], strides = [1, 1, 1]} : vector<2x16x16xf32> to vector<2x16x8xf32>
    %90 = arith.addf %88, %89 : vector<2x16x8xf32>
    %cst_41 = arith.constant 0.000000e+00 : f32
    %91 = vector.broadcast %cst_41 : f32 to vector<2x16x8xf32>
    %92 = arith.subf %91, %90 : vector<2x16x8xf32>
    %cst_42 = arith.constant dense<0xFF800000> : vector<2x16xf32>
    %93 = vector.multi_reduction <maximumf>, %92, %cst_42 [2] : vector<2x16x8xf32> to vector<2x16xf32>
    %94 = vector.shape_cast %93 : vector<2x16xf32> to vector<2x16x1xf32>
    %95 = vector.broadcast %94 : vector<2x16x1xf32> to vector<2x16x8xf32>
    %96 = arith.subf %92, %95 : vector<2x16x8xf32>
    %97 = vector.broadcast %94 : vector<2x16x1xf32> to vector<2x16x8xf32>
    %98 = arith.subf %92, %97 : vector<2x16x8xf32>
    %99 = math.exp %98 : vector<2x16x8xf32>
    %cst_43 = arith.constant dense<0.000000e+00> : vector<2x16xf32>
    %100 = vector.multi_reduction <add>, %99, %cst_43 [2] : vector<2x16x8xf32> to vector<2x16xf32>
    %101 = vector.shape_cast %100 : vector<2x16xf32> to vector<2x16x1xf32>
    %102 = math.log %101 : vector<2x16x1xf32>
    %103 = vector.broadcast %102 : vector<2x16x1xf32> to vector<2x16x8xf32>
    %104 = arith.subf %96, %103 : vector<2x16x8xf32>
    %cst_44 = arith.constant 0.000000e+00 : f32
    %105 = vector.broadcast %cst_44 : f32 to vector<2x8xf32>
    %106 = arith.minimumf %59, %105 : vector<2x8xf32>
    %107 = math.absf %59 : vector<2x8xf32>
    %cst_45 = arith.constant 0.000000e+00 : f32
    %108 = vector.broadcast %cst_45 : f32 to vector<2x8xf32>
    %109 = arith.subf %108, %107 : vector<2x8xf32>
    %110 = math.exp %109 : vector<2x8xf32>
    %cst_46 = arith.constant 1.000000e+00 : f32
    %111 = vector.broadcast %cst_46 : f32 to vector<2x8xf32>
    %112 = arith.addf %111, %110 : vector<2x8xf32>
    %113 = math.log %112 : vector<2x8xf32>
    %114 = arith.subf %106, %113 : vector<2x8xf32>
    %115 = vector.shape_cast %114 : vector<2x8xf32> to vector<2x1x8xf32>
    %116 = vector.broadcast %115 : vector<2x1x8xf32> to vector<2x16x8xf32>
    %117 = arith.addf %116, %104 : vector<2x16x8xf32>
    %cst_47 = arith.constant dense<0xFF800000> : vector<2x16xf32>
    %118 = vector.multi_reduction <maximumf>, %117, %cst_47 [2] : vector<2x16x8xf32> to vector<2x16xf32>
    %119 = vector.shape_cast %118 : vector<2x16xf32> to vector<2x16x1xf32>
    %120 = vector.broadcast %119 : vector<2x16x1xf32> to vector<2x16x8xf32>
    %121 = arith.subf %117, %120 : vector<2x16x8xf32>
    %122 = math.exp %121 : vector<2x16x8xf32>
    %cst_48 = arith.constant dense<0.000000e+00> : vector<2x16xf32>
    %123 = vector.multi_reduction <add>, %122, %cst_48 [2] : vector<2x16x8xf32> to vector<2x16xf32>
    %124 = vector.shape_cast %123 : vector<2x16xf32> to vector<2x16x1xf32>
    %125 = vector.broadcast %124 : vector<2x16x1xf32> to vector<2x16x8xf32>
    %126 = arith.divf %122, %125 : vector<2x16x8xf32>
    %127 = vector.broadcast %7 : vector<2x16x1xf32> to vector<2x16x8xf32>
    %128 = arith.mulf %127, %126 : vector<2x16x8xf32>
    %129 = vector.broadcast %7 : vector<2x16x1xf32> to vector<2x16x8xf32>
    %130 = arith.subf %129, %128 : vector<2x16x8xf32>
    %131 = vector.broadcast %44 : vector<1x16x8xf32> to vector<2x16x8xf32>
    %132 = arith.mulf %131, %128 : vector<2x16x8xf32>
    %cst_49 = arith.constant dense<0.000000e+00> : vector<2x8xf32>
    %133 = vector.multi_reduction <add>, %132, %cst_49 [1] : vector<2x16x8xf32> to vector<2x8xf32>
    %134 = vector.broadcast %46 : vector<1x16x8xf32> to vector<2x16x8xf32>
    %135 = arith.mulf %134, %130 : vector<2x16x8xf32>
    %cst_50 = arith.constant dense<0.000000e+00> : vector<2x8xf32>
    %136 = vector.multi_reduction <add>, %135, %cst_50 [1] : vector<2x16x8xf32> to vector<2x8xf32>
    %137 = arith.subf %133, %136 : vector<2x8xf32>
    %cst_51 = arith.constant dense<0.000000e+00> : vector<2x8xf32>
    %138 = vector.multi_reduction <add>, %128, %cst_51 [1] : vector<2x16x8xf32> to vector<2x8xf32>
    %cst_52 = arith.constant 9.99999974E-6 : f32
    %139 = vector.broadcast %cst_52 : f32 to vector<2x8xf32>
    %140 = arith.addf %138, %139 : vector<2x8xf32>
    %141 = tpu.reciprocal %140 : vector<2x8xf32> -> vector<2x8xf32>
    %142 = tpu.concatenate %141, %141 in 1 : vector<2x8xf32>, vector<2x8xf32> -> vector<2x16xf32>
    %143 = tpu.concatenate %142, %142 in 1 : vector<2x16xf32>, vector<2x16xf32> -> vector<2x32xf32>
    %144 = tpu.concatenate %143, %143 in 1 : vector<2x32xf32>, vector<2x32xf32> -> vector<2x64xf32>
    %145 = tpu.concatenate %144, %144 in 1 : vector<2x64xf32>, vector<2x64xf32> -> vector<2x128xf32>
    %146 = tpu.concatenate %128, %128 in 2 : vector<2x16x8xf32>, vector<2x16x8xf32> -> vector<2x16x16xf32>
    %147 = tpu.concatenate %146, %146 in 2 : vector<2x16x16xf32>, vector<2x16x16xf32> -> vector<2x16x32xf32>
    %148 = tpu.concatenate %147, %147 in 2 : vector<2x16x32xf32>, vector<2x16x32xf32> -> vector<2x16x64xf32>
    %149 = tpu.concatenate %148, %148 in 2 : vector<2x16x64xf32>, vector<2x16x64xf32> -> vector<2x16x128xf32>
    %150 = arith.mulf %149, %42 : vector<2x16x128xf32>
    %cst_53 = arith.constant dense<0.000000e+00> : vector<2x128xf32>
    %151 = vector.multi_reduction <add>, %150, %cst_53 [1] : vector<2x16x128xf32> to vector<2x128xf32>
    %152 = arith.mulf %151, %145 : vector<2x128xf32>
    %153 = vector.shape_cast %152 : vector<2x128xf32> to vector<2x1x128xf32>
    %154 = vector.broadcast %153 : vector<2x1x128xf32> to vector<2x16x128xf32>
    %155 = arith.subf %42, %154 : vector<2x16x128xf32>
    %156 = arith.mulf %155, %155 : vector<2x16x128xf32>
    %157 = vector.extract_strided_slice %156 {offsets = [0, 0, 0], sizes = [2, 16, 64], strides = [1, 1, 1]} : vector<2x16x128xf32> to vector<2x16x64xf32>
    %158 = vector.extract_strided_slice %156 {offsets = [0, 0, 64], sizes = [2, 16, 64], strides = [1, 1, 1]} : vector<2x16x128xf32> to vector<2x16x64xf32>
    %159 = arith.addf %157, %158 : vector<2x16x64xf32>
    %160 = vector.extract_strided_slice %159 {offsets = [0, 0, 0], sizes = [2, 16, 32], strides = [1, 1, 1]} : vector<2x16x64xf32> to vector<2x16x32xf32>
    %161 = vector.extract_strided_slice %159 {offsets = [0, 0, 32], sizes = [2, 16, 32], strides = [1, 1, 1]} : vector<2x16x64xf32> to vector<2x16x32xf32>
    %162 = arith.addf %160, %161 : vector<2x16x32xf32>
    %163 = vector.extract_strided_slice %162 {offsets = [0, 0, 0], sizes = [2, 16, 16], strides = [1, 1, 1]} : vector<2x16x32xf32> to vector<2x16x16xf32>
    %164 = vector.extract_strided_slice %162 {offsets = [0, 0, 16], sizes = [2, 16, 16], strides = [1, 1, 1]} : vector<2x16x32xf32> to vector<2x16x16xf32>
    %165 = arith.addf %163, %164 : vector<2x16x16xf32>
    %166 = vector.extract_strided_slice %165 {offsets = [0, 0, 0], sizes = [2, 16, 8], strides = [1, 1, 1]} : vector<2x16x16xf32> to vector<2x16x8xf32>
    %167 = vector.extract_strided_slice %165 {offsets = [0, 0, 8], sizes = [2, 16, 8], strides = [1, 1, 1]} : vector<2x16x16xf32> to vector<2x16x8xf32>
    %168 = arith.addf %166, %167 : vector<2x16x8xf32>
    %cst_54 = arith.constant 0.000000e+00 : f32
    %169 = vector.broadcast %cst_54 : f32 to vector<2x16x8xf32>
    %170 = arith.subf %169, %168 : vector<2x16x8xf32>
    %cst_55 = arith.constant dense<0xFF800000> : vector<2x16xf32>
    %171 = vector.multi_reduction <maximumf>, %170, %cst_55 [2] : vector<2x16x8xf32> to vector<2x16xf32>
    %172 = vector.shape_cast %171 : vector<2x16xf32> to vector<2x16x1xf32>
    %173 = vector.broadcast %172 : vector<2x16x1xf32> to vector<2x16x8xf32>
    %174 = arith.subf %170, %173 : vector<2x16x8xf32>
    %175 = vector.broadcast %172 : vector<2x16x1xf32> to vector<2x16x8xf32>
    %176 = arith.subf %170, %175 : vector<2x16x8xf32>
    %177 = math.exp %176 : vector<2x16x8xf32>
    %cst_56 = arith.constant dense<0.000000e+00> : vector<2x16xf32>
    %178 = vector.multi_reduction <add>, %177, %cst_56 [2] : vector<2x16x8xf32> to vector<2x16xf32>
    %179 = vector.shape_cast %178 : vector<2x16xf32> to vector<2x16x1xf32>
    %180 = math.log %179 : vector<2x16x1xf32>
    %181 = vector.broadcast %180 : vector<2x16x1xf32> to vector<2x16x8xf32>
    %182 = arith.subf %174, %181 : vector<2x16x8xf32>
    %cst_57 = arith.constant 0.000000e+00 : f32
    %183 = vector.broadcast %cst_57 : f32 to vector<2x8xf32>
    %184 = arith.minimumf %137, %183 : vector<2x8xf32>
    %185 = math.absf %137 : vector<2x8xf32>
    %cst_58 = arith.constant 0.000000e+00 : f32
    %186 = vector.broadcast %cst_58 : f32 to vector<2x8xf32>
    %187 = arith.subf %186, %185 : vector<2x8xf32>
    %188 = math.exp %187 : vector<2x8xf32>
    %cst_59 = arith.constant 1.000000e+00 : f32
    %189 = vector.broadcast %cst_59 : f32 to vector<2x8xf32>
    %190 = arith.addf %189, %188 : vector<2x8xf32>
    %191 = math.log %190 : vector<2x8xf32>
    %192 = arith.subf %184, %191 : vector<2x8xf32>
    %193 = vector.shape_cast %192 : vector<2x8xf32> to vector<2x1x8xf32>
    %194 = vector.broadcast %193 : vector<2x1x8xf32> to vector<2x16x8xf32>
    %195 = arith.addf %194, %182 : vector<2x16x8xf32>
    %cst_60 = arith.constant dense<0xFF800000> : vector<2x16xf32>
    %196 = vector.multi_reduction <maximumf>, %195, %cst_60 [2] : vector<2x16x8xf32> to vector<2x16xf32>
    %197 = vector.shape_cast %196 : vector<2x16xf32> to vector<2x16x1xf32>
    %198 = vector.broadcast %197 : vector<2x16x1xf32> to vector<2x16x8xf32>
    %199 = arith.subf %195, %198 : vector<2x16x8xf32>
    %200 = math.exp %199 : vector<2x16x8xf32>
    %cst_61 = arith.constant dense<0.000000e+00> : vector<2x16xf32>
    %201 = vector.multi_reduction <add>, %200, %cst_61 [2] : vector<2x16x8xf32> to vector<2x16xf32>
    %202 = vector.shape_cast %201 : vector<2x16xf32> to vector<2x16x1xf32>
    %203 = vector.broadcast %202 : vector<2x16x1xf32> to vector<2x16x8xf32>
    %204 = arith.divf %200, %203 : vector<2x16x8xf32>
    %205 = vector.broadcast %7 : vector<2x16x1xf32> to vector<2x16x8xf32>
    %206 = arith.mulf %205, %204 : vector<2x16x8xf32>
    %207 = vector.broadcast %7 : vector<2x16x1xf32> to vector<2x16x8xf32>
    %208 = arith.subf %207, %206 : vector<2x16x8xf32>
    %209 = vector.broadcast %44 : vector<1x16x8xf32> to vector<2x16x8xf32>
    %210 = arith.mulf %209, %206 : vector<2x16x8xf32>
    %cst_62 = arith.constant dense<0.000000e+00> : vector<2x8xf32>
    %211 = vector.multi_reduction <add>, %210, %cst_62 [1] : vector<2x16x8xf32> to vector<2x8xf32>
    %212 = vector.broadcast %46 : vector<1x16x8xf32> to vector<2x16x8xf32>
    %213 = arith.mulf %212, %208 : vector<2x16x8xf32>
    %cst_63 = arith.constant dense<0.000000e+00> : vector<2x8xf32>
    %214 = vector.multi_reduction <add>, %213, %cst_63 [1] : vector<2x16x8xf32> to vector<2x8xf32>
    %215 = arith.subf %211, %214 : vector<2x8xf32>
    %cst_64 = arith.constant dense<0.000000e+00> : vector<2x8xf32>
    %216 = vector.multi_reduction <add>, %206, %cst_64 [1] : vector<2x16x8xf32> to vector<2x8xf32>
    %cst_65 = arith.constant 9.99999974E-6 : f32
    %217 = vector.broadcast %cst_65 : f32 to vector<2x8xf32>
    %218 = arith.addf %216, %217 : vector<2x8xf32>
    %219 = tpu.reciprocal %218 : vector<2x8xf32> -> vector<2x8xf32>
    %220 = tpu.concatenate %219, %219 in 1 : vector<2x8xf32>, vector<2x8xf32> -> vector<2x16xf32>
    %221 = tpu.concatenate %220, %220 in 1 : vector<2x16xf32>, vector<2x16xf32> -> vector<2x32xf32>
    %222 = tpu.concatenate %221, %221 in 1 : vector<2x32xf32>, vector<2x32xf32> -> vector<2x64xf32>
    %223 = tpu.concatenate %222, %222 in 1 : vector<2x64xf32>, vector<2x64xf32> -> vector<2x128xf32>
    %224 = tpu.concatenate %206, %206 in 2 : vector<2x16x8xf32>, vector<2x16x8xf32> -> vector<2x16x16xf32>
    %225 = tpu.concatenate %224, %224 in 2 : vector<2x16x16xf32>, vector<2x16x16xf32> -> vector<2x16x32xf32>
    %226 = tpu.concatenate %225, %225 in 2 : vector<2x16x32xf32>, vector<2x16x32xf32> -> vector<2x16x64xf32>
    %227 = tpu.concatenate %226, %226 in 2 : vector<2x16x64xf32>, vector<2x16x64xf32> -> vector<2x16x128xf32>
    %228 = arith.mulf %227, %42 : vector<2x16x128xf32>
    %cst_66 = arith.constant dense<0.000000e+00> : vector<2x128xf32>
    %229 = vector.multi_reduction <add>, %228, %cst_66 [1] : vector<2x16x128xf32> to vector<2x128xf32>
    %230 = arith.mulf %229, %223 : vector<2x128xf32>
    %231 = vector.shape_cast %230 : vector<2x128xf32> to vector<2x1x128xf32>
    %232 = vector.broadcast %231 : vector<2x1x128xf32> to vector<2x16x128xf32>
    %233 = arith.subf %42, %232 : vector<2x16x128xf32>
    %234 = arith.mulf %233, %233 : vector<2x16x128xf32>
    %235 = arith.mulf %227, %234 : vector<2x16x128xf32>
    %cst_67 = arith.constant dense<0.000000e+00> : vector<2x128xf32>
    %236 = vector.multi_reduction <add>, %235, %cst_67 [1] : vector<2x16x128xf32> to vector<2x128xf32>
    %237 = arith.mulf %236, %223 : vector<2x128xf32>
    %cst_68 = arith.constant 9.99999974E-6 : f32
    %238 = vector.broadcast %cst_68 : f32 to vector<2x128xf32>
    %239 = arith.addf %237, %238 : vector<2x128xf32>
    %c0_69 = arith.constant 0 : index
    %c0_70 = arith.constant 0 : index
    %240 = vector.load %arg7[%c0_69, %c0_70] : memref<2x8xf32, #tpu.memory_space<vmem>>, vector<2x8xf32>
    tpu.vector_store %arg7[%c0_69, %c0_70], %215 {strides = array<i32>} : memref<2x8xf32, #tpu.memory_space<vmem>>, vector<2x8xf32>,
    %c0_71 = arith.constant 0 : index
    %c0_72 = arith.constant 0 : index
    %241 = vector.load %arg8[%c0_71, %c0_72] : memref<2x128xf32, #tpu.memory_space<vmem>>, vector<2x128xf32>
    tpu.vector_store %arg8[%c0_71, %c0_72], %230 {strides = array<i32>} : memref<2x128xf32, #tpu.memory_space<vmem>>, vector<2x128xf32>,
    %c0_73 = arith.constant 0 : index
    %c0_74 = arith.constant 0 : index
    %242 = vector.load %arg9[%c0_73, %c0_74] : memref<2x128xf32, #tpu.memory_space<vmem>>, vector<2x128xf32>
    tpu.vector_store %arg9[%c0_73, %c0_74], %239 {strides = array<i32>} : memref<2x128xf32, #tpu.memory_space<vmem>>, vector<2x128xf32>,
    return
  }
  func.func @transform_0(%arg0: i32) -> (i32, i32, i32) {
    %c0_i32 = arith.constant 0 : i32
    %c0_i32_0 = arith.constant 0 : i32
    %c0_i32_1 = arith.constant 0 : i32
    return %arg0, %c0_i32, %c0_i32_0 : i32, i32, i32
  }
  func.func @transform_1(%arg0: i32) -> (i32, i32, i32, i32) {
    %c0_i32 = arith.constant 0 : i32
    %c0_i32_0 = arith.constant 0 : i32
    %c0_i32_1 = arith.constant 0 : i32
    %c0_i32_2 = arith.constant 0 : i32
    return %c0_i32, %arg0, %c0_i32_0, %c0_i32_1 : i32, i32, i32, i32
  }
  func.func @transform_2(%arg0: i32) -> (i32, i32, i32) {
    %c0_i32 = arith.constant 0 : i32
    %c0_i32_0 = arith.constant 0 : i32
    %c0_i32_1 = arith.constant 0 : i32
    %c0_i32_2 = arith.constant 0 : i32
    return %c0_i32, %c0_i32_0, %c0_i32_1 : i32, i32, i32
  }
  func.func @transform_3(%arg0: i32) -> (i32, i32) {
    %c0_i32 = arith.constant 0 : i32
    %c0_i32_0 = arith.constant 0 : i32
    %c0_i32_1 = arith.constant 0 : i32
    return %c0_i32, %c0_i32_0 : i32, i32
  }
  func.func @transform_4(%arg0: i32) -> (i32, i32) {
    %c0_i32 = arith.constant 0 : i32
    %c0_i32_0 = arith.constant 0 : i32
    %c0_i32_1 = arith.constant 0 : i32
    return %c0_i32, %c0_i32_0 : i32, i32
  }
  func.func @transform_5(%arg0: i32) -> (i32, i32) {
    %c0_i32 = arith.constant 0 : i32
    %c0_i32_0 = arith.constant 0 : i32
    %c0_i32_1 = arith.constant 0 : i32
    return %c0_i32, %c0_i32_0 : i32, i32
  }
  func.func @transform_6(%arg0: i32) -> (i32, i32) {
    %c0_i32 = arith.constant 0 : i32
    %c0_i32_0 = arith.constant 0 : i32
    return %arg0, %c0_i32 : i32, i32
  }
  func.func @transform_7(%arg0: i32) -> (i32, i32) {
    %c0_i32 = arith.constant 0 : i32
    %c0_i32_0 = arith.constant 0 : i32
    return %arg0, %c0_i32 : i32, i32
  }
  func.func @transform_8(%arg0: i32) -> (i32, i32) {
    %c0_i32 = arith.constant 0 : i32
    %c0_i32_0 = arith.constant 0 : i32
    return %arg0, %c0_i32 : i32, i32
  }
}

</mosaic_0001>

<llo_original>
// kernel: routing_forward.1
$region0: #{routing_forward.1}
  #allocation0 [shape = 'u32[]', space=smem, size = 0x4, offset = 0x4, fixed_abs, tag = 'smem constant byte address 0x4 - core index']
  #allocation1 [shape = 'u32[144,128]{1,0:T(1,128)}', space=vmem, size = 0x12000, scoped, tag = 'internal scratch']
  %s0 = inlined_call_operand.vmem [shape: f32[2,16,1], index: 0, kind: input, shape index: {}]
  %s1 = inlined_call_operand.vmem [shape: f32[4,2,16,128], index: 1, kind: input, shape index: {}]
  %s2 = inlined_call_operand.vmem [shape: f32[4,16,128], index: 2, kind: input, shape index: {}]
  %s3 = inlined_call_operand.vmem [shape: f32[16,128], index: 3, kind: input, shape index: {}]
  %s4 = inlined_call_operand.vmem [shape: f32[16,8], index: 4, kind: input, shape index: {}]
  %s5 = inlined_call_operand.vmem [shape: f32[16,8], index: 5, kind: input, shape index: {}]
  %s6 = inlined_call_operand.hbm [shape: f32[2,8], index: 6, kind: output, shape index: {0}]
  %s7 = inlined_call_operand.vmem [shape: f32[2,128], index: 7, kind: output, shape index: {1}]
  %s8 = inlined_call_operand.vmem [shape: f32[2,128], index: 8, kind: output, shape index: {2}]
  %9 = xla_tuple %s6, %s7, %s8
  %s10 = sld [smem:[#allocation0]]
  $region50: #{routing_forward.1} parent=0
    _
  %s12 = ssub.s32 1, %s10
  %s13 = scalar_select 0, %s12, %s10
  $region1: #{routing_forward.1} parent=0
    #allocation2 [shape = 'u8[1024]{0}', space=vmem, size = 0x400, scoped, tag = 'output window, operand 0, single buffered']
    #allocation3 [shape = 's32[1]{0}', space=sflag, size = 0x4, scoped, tag = 'scoped memory for routing_forward.1']
    %14 = vsyncpa [#allocation3], 0
    // Predicated region
    $region2: #{routing_forward.1} parent=1 // pred_check
      _
    $region3: #{routing_forward.1} parent=1 // pred_check_branch
      %16 = sbr.rel (0) target = $region5
    $region4: #{routing_forward.1} parent=1 // pred_region
      _
    $region5: #{routing_forward.1} parent=1 // pred_fallthru
      _
    // Predicated region
    $region6: #{routing_forward.1} parent=1 // pred_check
      _
    $region7: #{routing_forward.1} parent=1 // pred_check_branch
      %18 = sbr.rel (0) target = $region9
    $region8: #{routing_forward.1} parent=1 // pred_region
      _
    $region9: #{routing_forward.1} parent=1 // pred_fallthru
      _
    // Predicated region
    $region10: #{routing_forward.1} parent=1 // pred_check
      _
    $region11: #{routing_forward.1} parent=1 // pred_check_branch
      %20 = sbr.rel (0) target = $region13
    $region12: #{routing_forward.1} parent=1 // pred_region
      _
    $region13: #{routing_forward.1} parent=1 // pred_fallthru
      _
    // Predicated region
    $region14: #{routing_forward.1} parent=1 // pred_check
      _
    $region15: #{routing_forward.1} parent=1 // pred_check_branch
      %22 = sbr.rel (0) target = $region17
    $region16: #{routing_forward.1} parent=1 // pred_region
      _
    $region17: #{routing_forward.1} parent=1 // pred_fallthru
      _
    // Predicated region
    $region18: #{routing_forward.1} parent=1 // pred_check
      _
    $region19: #{routing_forward.1} parent=1 // pred_check_branch
      %24 = sbr.rel (0) target = $region21
    $region20: #{routing_forward.1} parent=1 // pred_region
      _
    $region21: #{routing_forward.1} parent=1 // pred_fallthru
      _
    // Predicated region
    $region22: #{routing_forward.1} parent=1 // pred_check
      _
    $region23: #{routing_forward.1} parent=1 // pred_check_branch
      %26 = sbr.rel (0) target = $region25
    $region24: #{routing_forward.1} parent=1 // pred_region
      _
    $region25: #{routing_forward.1} parent=1 // pred_fallthru
      _
    %v27 = vld [vmem:[%s0] sm:$0xff]
    %v28 = vld [vmem:[%s0 + $0x8] sm:$0xff]
    %v29 = vld [vmem:[%s0 + $0x10] sm:$0xff]
    %v30 = vld [vmem:[%s0 + $0x18] sm:$0xff]
    %v31 = vsub.f32 0.0, %v27
    %v32 = vsub.f32 0.0, %v28
    %v33 = vsub.f32 0.0, %v29
    %v34 = vsub.f32 0.0, %v30
    %v35 = vmul.f32 %v31, 1.442695
    %v36 = vpow.pop %v35
    %v37 = vmul.f32 %v32, 1.442695
    %v38 = vpow.pop %v37
    %v39 = vmul.f32 %v33, 1.442695
    %v40 = vpow.pop %v39
    %v41 = vmul.f32 %v34, 1.442695
    %v42 = vpow.pop %v41
    %v43 = vadd.f32 %v36, 1.0
    %v44 = vadd.f32 %v38, 1.0
    %v45 = vadd.f32 %v40, 1.0
    %v46 = vadd.f32 %v42, 1.0
    %v47 = vrcp.pop %v43
    %v48 = vmul.f32 1.0, %v47
    %v49 = vrcp.pop %v44
    %v50 = vmul.f32 1.0, %v49
    %v51 = vrcp.pop %v45
    %v52 = vmul.f32 1.0, %v51
    %v53 = vrcp.pop %v46
    %v54 = vmul.f32 1.0, %v53
    %v55 = vld [vmem:[%s1] sm:$0xff]
    %v56 = vld [vmem:[%s1 + $0x8] sm:$0xff]
    %v57 = vld [vmem:[%s1 + $0x10] sm:$0xff]
    %v58 = vld [vmem:[%s1 + $0x18] sm:$0xff]
    %v59 = vld [vmem:[%s2] sm:$0xff]
    %v60 = vld [vmem:[%s2 + $0x8] sm:$0xff]
    %v61 = vmul.f32 %v55, %v59
    %v62 = vmul.f32 %v56, %v60
    %v63 = vmul.f32 %v57, %v59
    %v64 = vmul.f32 %v58, %v60
    %s65 = scalar_lea.vmem %s1, 32
    %v66 = vld [vmem:[%s65] sm:$0xff]
    %v67 = vld [vmem:[%s65 + $0x8] sm:$0xff]
    %v68 = vld [vmem:[%s65 + $0x10] sm:$0xff]
    %v69 = vld [vmem:[%s65 + $0x18] sm:$0xff]
    %s70 = scalar_lea.vmem %s2, 16
    %v71 = vld [vmem:[%s70] sm:$0xff]
    %v72 = vld [vmem:[%s70 + $0x8] sm:$0xff]
    %v73 = vmul.f32 %v66, %v71
    %v74 = vmul.f32 %v67, %v72
    %v75 = vmul.f32 %v68, %v71
    %v76 = vmul.f32 %v69, %v72
    %v77 = vadd.f32 %v61, %v73
    %v78 = vadd.f32 %v62, %v74
    %v79 = vadd.f32 %v63, %v75
    %v80 = vadd.f32 %v64, %v76
    %s81 = scalar_lea.vmem %s1, 64
    %v82 = vld [vmem:[%s81] sm:$0xff]
    %v83 = vld [vmem:[%s81 + $0x8] sm:$0xff]
    %v84 = vld [vmem:[%s81 + $0x10] sm:$0xff]
    %v85 = vld [vmem:[%s81 + $0x18] sm:$0xff]
    %s86 = scalar_lea.vmem %s2, 32
    %v87 = vld [vmem:[%s86] sm:$0xff]
    %v88 = vld [vmem:[%s86 + $0x8] sm:$0xff]
    %v89 = vmul.f32 %v82, %v87
    %v90 = vmul.f32 %v83, %v88
    %v91 = vmul.f32 %v84, %v87
    %v92 = vmul.f32 %v85, %v88
    %v93 = vadd.f32 %v77, %v89
    %v94 = vadd.f32 %v78, %v90
    %v95 = vadd.f32 %v79, %v91
    %v96 = vadd.f32 %v80, %v92
    %s97 = scalar_lea.vmem %s1, 96
    %v98 = vld [vmem:[%s97] sm:$0xff]
    %v99 = vld [vmem:[%s97 + $0x8] sm:$0xff]
    %v100 = vld [vmem:[%s97 + $0x10] sm:$0xff]
    %v101 = vld [vmem:[%s97 + $0x18] sm:$0xff]
    %s102 = scalar_lea.vmem %s2, 48
    %v103 = vld [vmem:[%s102] sm:$0xff]
    %v104 = vld [vmem:[%s102 + $0x8] sm:$0xff]
    %v105 = vmul.f32 %v98, %v103
    %v106 = vmul.f32 %v99, %v104
    %v107 = vmul.f32 %v100, %v103
    %v108 = vmul.f32 %v101, %v104
    %v109 = vadd.f32 %v93, %v105
    %v110 = vadd.f32 %v94, %v106
    %v111 = vadd.f32 %v95, %v107
    %v112 = vadd.f32 %v96, %v108
    %v113 = vld [vmem:[%s3] sm:$0xff]
    %v114 = vld [vmem:[%s3 + $0x8] sm:$0xff]
    %v115 = vadd.f32 %v109, %v113
    %v116 = vadd.f32 %v110, %v114
    %v117 = vadd.f32 %v111, %v113
    %v118 = vadd.f32 %v112, %v114
    %v119 = vld [vmem:[%s4] sm:$0xff]
    %v120 = vld [vmem:[%s4 + $0x8] sm:$0xff]
    %v121 = vld [vmem:[%s5] sm:$0xff]
    %v122 = vld [vmem:[%s5 + $0x8] sm:$0xff]
    %v123 = vmul.f32 %v48, 0.125
    %v124 = vmul.f32 %v50, 0.125
    %v125 = vmul.f32 %v52, 0.125
    %v126 = vmul.f32 %v54, 0.125
    %128 = vset.pattern.permute.xlu0 0
    %129 = vperm.xlu0 %128, %v123
    %v130 = vpop.permute.xlu0 %129
    %133 = vset.pattern.permute.xlu0 0
    %134 = vperm.xlu0 %133, %v124
    %v135 = vpop.permute.xlu0 %134
    %138 = vset.pattern.permute.xlu0 0
    %139 = vperm.xlu0 %138, %v125
    %v140 = vpop.permute.xlu0 %139
    %143 = vset.pattern.permute.xlu0 0
    %144 = vperm.xlu0 %143, %v126
    %v145 = vpop.permute.xlu0 %144
    %148 = vset.pattern.permute.xlu0 0
    %149 = vperm.xlu0 %148, %v48
    %v150 = vpop.permute.xlu0 %149
    %153 = vset.pattern.permute.xlu0 0
    %154 = vperm.xlu0 %153, %v50
    %v155 = vpop.permute.xlu0 %154
    %158 = vset.pattern.permute.xlu0 0
    %159 = vperm.xlu0 %158, %v52
    %v160 = vpop.permute.xlu0 %159
    %163 = vset.pattern.permute.xlu0 0
    %164 = vperm.xlu0 %163, %v54
    %v165 = vpop.permute.xlu0 %164
    %v167 = vsub.f32 %v150, %v130
    %v168 = vsub.f32 %v155, %v135
    %v169 = vsub.f32 %v160, %v140
    %v170 = vsub.f32 %v165, %v145
    %v171 = vmul.f32 %v119, %v130
    %v172 = vmul.f32 %v120, %v135
    %v173 = vmul.f32 %v119, %v140
    %v174 = vmul.f32 %v120, %v145
    %vm175 = vcmask 64512
    %v176 = vsel %vm175, %v171, 0.0
    %v177 = vsel %vm175, %v172, 0.0
    %v178 = vadd.f32 %v176, %v177
    %v179 = vrot.slane %v178, 4
    %v180 = vadd.f32 %v178, %v179
    %v181 = vrot.slane %v180, 2
    %v182 = vadd.f32 %v180, %v181
    %v183 = vrot.slane %v182, 1
    %v184 = vadd.f32 %v182, %v183
    %v185 = vsel %vm175, %v173, 0.0
    %v186 = vsel %vm175, %v174, 0.0
    %v187 = vadd.f32 %v185, %v186
    %v188 = vrot.slane %v187, 4
    %v189 = vadd.f32 %v187, %v188
    %v190 = vrot.slane %v189, 2
    %v191 = vadd.f32 %v189, %v190
    %v192 = vrot.slane %v191, 1
    %v193 = vadd.f32 %v191, %v192
    %v194 = vmul.f32 %v121, %v167
    %v195 = vmul.f32 %v122, %v168
    %v196 = vmul.f32 %v121, %v169
    %v197 = vmul.f32 %v122, %v170
    %v198 = vsel %vm175, %v194, 0.0
    %v199 = vsel %vm175, %v195, 0.0
    %v200 = vadd.f32 %v198, %v199
    %v201 = vrot.slane %v200, 4
    %v202 = vadd.f32 %v200, %v201
    %v203 = vrot.slane %v202, 2
    %v204 = vadd.f32 %v202, %v203
    %v205 = vrot.slane %v204, 1
    %v206 = vadd.f32 %v204, %v205
    %v207 = vsel %vm175, %v196, 0.0
    %v208 = vsel %vm175, %v197, 0.0
    %v209 = vadd.f32 %v207, %v208
    %v210 = vrot.slane %v209, 4
    %v211 = vadd.f32 %v209, %v210
    %v212 = vrot.slane %v211, 2
    %v213 = vadd.f32 %v211, %v212
    %v214 = vrot.slane %v213, 1
    %v215 = vadd.f32 %v213, %v214
    %v216 = vsub.f32 %v184, %v206
    %v217 = vsub.f32 %v193, %v215
    %v218 = vadd.f32 %v130, %v135
    %v219 = vrot.slane %v218, 4
    %v220 = vadd.f32 %v218, %v219
    %v221 = vrot.slane %v220, 2
    %v222 = vadd.f32 %v220, %v221
    %v223 = vrot.slane %v222, 1
    %v224 = vadd.f32 %v222, %v223
    %v225 = vadd.f32 %v140, %v145
    %v226 = vrot.slane %v225, 4
    %v227 = vadd.f32 %v225, %v226
    %v228 = vrot.slane %v227, 2
    %v229 = vadd.f32 %v227, %v228
    %v230 = vrot.slane %v229, 1
    %v231 = vadd.f32 %v229, %v230
    %v232 = vadd.f32 %v224, 1e-05
    %v233 = vadd.f32 %v231, 1e-05
    %v234 = vrcp.pop %v232
    %v235 = vrcp.pop %v233
    %vm238 = vcmask 1041409
    %v239 = vsel %vm238, %v235, %v234
    %242 = vrot.lane.b32.xlu0 %v239, 16
    %v243 = vpop.permute.xlu0 %242
    %vm245 = vcmask 130048
    %v246 = vsel %vm245, %v239, %v243
    %248 = vrot.lane.b32.xlu0 %v246, 32
    %v249 = vpop.permute.xlu0 %248
    %vm251 = vcmask 261120
    %v252 = vsel %vm251, %v246, %v249
    %254 = vrot.lane.b32.xlu0 %v252, 64
    %v255 = vpop.permute.xlu0 %254
    %vm257 = vcmask 523264
    %v258 = vsel %vm257, %v252, %v255
    %259 = vrot.lane.b32.xlu0 %v130, 16
    %v260 = vpop.permute.xlu0 %259
    %261 = vrot.lane.b32.xlu0 %v135, 16
    %v262 = vpop.permute.xlu0 %261
    %263 = vrot.lane.b32.xlu0 %v140, 16
    %v264 = vpop.permute.xlu0 %263
    %265 = vrot.lane.b32.xlu0 %v145, 16
    %v266 = vpop.permute.xlu0 %265
    %v271 = vsel %vm245, %v130, %v260
    %v272 = vsel %vm245, %v135, %v262
    %v273 = vsel %vm245, %v140, %v264
    %v274 = vsel %vm245, %v145, %v266
    %279 = vrot.lane.b32.xlu0 %v271, 32
    %v280 = vpop.permute.xlu0 %279
    %281 = vrot.lane.b32.xlu0 %v272, 32
    %v282 = vpop.permute.xlu0 %281
    %283 = vrot.lane.b32.xlu0 %v273, 32
    %v284 = vpop.permute.xlu0 %283
    %285 = vrot.lane.b32.xlu0 %v274, 32
    %v286 = vpop.permute.xlu0 %285
    %v291 = vsel %vm251, %v271, %v280
    %v292 = vsel %vm251, %v272, %v282
    %v293 = vsel %vm251, %v273, %v284
    %v294 = vsel %vm251, %v274, %v286
    %299 = vrot.lane.b32.xlu0 %v291, 64
    %v300 = vpop.permute.xlu0 %299
    %301 = vrot.lane.b32.xlu0 %v292, 64
    %v302 = vpop.permute.xlu0 %301
    %303 = vrot.lane.b32.xlu0 %v293, 64
    %v304 = vpop.permute.xlu0 %303
    %305 = vrot.lane.b32.xlu0 %v294, 64
    %v306 = vpop.permute.xlu0 %305
    %v311 = vsel %vm257, %v291, %v300
    %v312 = vsel %vm257, %v292, %v302
    %v313 = vsel %vm257, %v293, %v304
    %v314 = vsel %vm257, %v294, %v306
    %v315 = vmul.f32 %v311, %v115
    %v316 = vmul.f32 %v312, %v116
    %v317 = vmul.f32 %v313, %v117
    %v318 = vmul.f32 %v314, %v118
    %v319 = vadd.f32 %v315, %v316
    %v320 = vrot.slane %v319, 4
    %v321 = vadd.f32 %v319, %v320
    %v322 = vrot.slane %v321, 2
    %v323 = vadd.f32 %v321, %v322
    %v324 = vrot.slane %v323, 1
    %v325 = vadd.f32 %v323, %v324
    %v326 = vadd.f32 %v317, %v318
    %v327 = vrot.slane %v326, 4
    %v328 = vadd.f32 %v326, %v327
    %v329 = vrot.slane %v328, 2
    %v330 = vadd.f32 %v328, %v329
    %v331 = vrot.slane %v330, 1
    %v332 = vadd.f32 %v330, %v331
    %v334 = vrot.slane %v258, 1
    %v337 = vmul.f32 %v325, %v258
    %v338 = vmul.f32 %v332, %v334
    %v339 = vlaneseq
    %v340 = vshrl.u32 %v339, 7
    %v341 = vsub.s32 0, %v340
    %v342 = vrot.slane %v337, %v341
    %v343 = vlaneseq
    %v344 = vshrl.u32 %v343, 7
    %v345 = vsub.s32 0, %v344
    %v346 = vrot.slane %v338, %v345
    %v347 = vsub.f32 %v115, %v342
    %v348 = vsub.f32 %v116, %v342
    %v349 = vsub.f32 %v117, %v346
    %v350 = vsub.f32 %v118, %v346
    %v351 = vmul.f32 %v347, %v347
    %v352 = vmul.f32 %v348, %v348
    %v353 = vmul.f32 %v349, %v349
    %v354 = vmul.f32 %v350, %v350
    %359 = vrot.lane.b32.xlu0 %v351, 64
    %v360 = vpop.permute.xlu0 %359
    %361 = vrot.lane.b32.xlu0 %v352, 64
    %v362 = vpop.permute.xlu0 %361
    %363 = vrot.lane.b32.xlu0 %v353, 64
    %v364 = vpop.permute.xlu0 %363
    %365 = vrot.lane.b32.xlu0 %v354, 64
    %v366 = vpop.permute.xlu0 %365
    %v371 = vadd.f32 %v351, %v360
    %v372 = vadd.f32 %v352, %v362
    %v373 = vadd.f32 %v353, %v364
    %v374 = vadd.f32 %v354, %v366
    %379 = vrot.lane.b32.xlu0 %v371, 96
    %v380 = vpop.permute.xlu0 %379
    %381 = vrot.lane.b32.xlu0 %v372, 96
    %v382 = vpop.permute.xlu0 %381
    %383 = vrot.lane.b32.xlu0 %v373, 96
    %v384 = vpop.permute.xlu0 %383
    %385 = vrot.lane.b32.xlu0 %v374, 96
    %v386 = vpop.permute.xlu0 %385
    %v391 = vadd.f32 %v371, %v380
    %v392 = vadd.f32 %v372, %v382
    %v393 = vadd.f32 %v373, %v384
    %v394 = vadd.f32 %v374, %v386
    %399 = vrot.lane.b32.xlu0 %v391, 112
    %v400 = vpop.permute.xlu0 %399
    %401 = vrot.lane.b32.xlu0 %v392, 112
    %v402 = vpop.permute.xlu0 %401
    %403 = vrot.lane.b32.xlu0 %v393, 112
    %v404 = vpop.permute.xlu0 %403
    %405 = vrot.lane.b32.xlu0 %v394, 112
    %v406 = vpop.permute.xlu0 %405
    %v411 = vadd.f32 %v391, %v400
    %v412 = vadd.f32 %v392, %v402
    %v413 = vadd.f32 %v393, %v404
    %v414 = vadd.f32 %v394, %v406
    %419 = vrot.lane.b32.xlu0 %v411, 120
    %v420 = vpop.permute.xlu0 %419
    %421 = vrot.lane.b32.xlu0 %v412, 120
    %v422 = vpop.permute.xlu0 %421
    %423 = vrot.lane.b32.xlu0 %v413, 120
    %v424 = vpop.permute.xlu0 %423
    %425 = vrot.lane.b32.xlu0 %v414, 120
    %v426 = vpop.permute.xlu0 %425
    %v431 = vadd.f32 %v411, %v420
    %v432 = vadd.f32 %v412, %v422
    %v433 = vadd.f32 %v413, %v424
    %v434 = vadd.f32 %v414, %v426
    %v435 = vsub.f32 0.0, %v431
    %v436 = vsub.f32 0.0, %v432
    %v437 = vsub.f32 0.0, %v433
    %v438 = vsub.f32 0.0, %v434
    %v439 = vsel %vm175, %v435, -inf
    %440 = vmax.xlane.f32.xlu0 %v439
    %v441 = vpop.xlane.xlu0 %440
    %v442 = vsel %vm175, %v436, -inf
    %443 = vmax.xlane.f32.xlu0 %v442
    %v444 = vpop.xlane.xlu0 %443
    %v445 = vsel %vm175, %v437, -inf
    %446 = vmax.xlane.f32.xlu0 %v445
    %v447 = vpop.xlane.xlu0 %446
    %v448 = vsel %vm175, %v438, -inf
    %449 = vmax.xlane.f32.xlu0 %v448
    %v450 = vpop.xlane.xlu0 %449
    %v451 = vsub.f32 %v435, %v441
    %v452 = vsub.f32 %v436, %v444
    %v453 = vsub.f32 %v437, %v447
    %v454 = vsub.f32 %v438, %v450
    %v455 = vmul.f32 %v451, 1.442695
    %v456 = vpow.pop %v455
    %v457 = vmul.f32 %v452, 1.442695
    %v458 = vpow.pop %v457
    %v459 = vmul.f32 %v453, 1.442695
    %v460 = vpow.pop %v459
    %v461 = vmul.f32 %v454, 1.442695
    %v462 = vpow.pop %v461
    %v463 = vsel %vm175, %v456, 0.0
    %464 = vadd.xlane.f32.xlu0 %v463
    %v465 = vpop.xlane.xlu0 %464
    %v466 = vsel %vm175, %v458, 0.0
    %467 = vadd.xlane.f32.xlu0 %v466
    %v468 = vpop.xlane.xlu0 %467
    %v469 = vsel %vm175, %v460, 0.0
    %470 = vadd.xlane.f32.xlu0 %v469
    %v471 = vpop.xlane.xlu0 %470
    %v472 = vsel %vm175, %v462, 0.0
    %473 = vadd.xlane.f32.xlu0 %v472
    %v474 = vpop.xlane.xlu0 %473
    %v475 = vlog2.pop %v465
    %v476 = vmul.f32 %v475, 0.6931472
    %v477 = vlog2.pop %v468
    %v478 = vmul.f32 %v477, 0.6931472
    %v479 = vlog2.pop %v471
    %v480 = vmul.f32 %v479, 0.6931472
    %v481 = vlog2.pop %v474
    %v482 = vmul.f32 %v481, 0.6931472
    %v483 = vsub.f32 %v451, %v476
    %v484 = vsub.f32 %v452, %v478
    %v485 = vsub.f32 %v453, %v480
    %v486 = vsub.f32 %v454, %v482
    %v487 = vmin.f32 %v216, 0.0
    %v488 = vmin.f32 %v217, 0.0
    %v489 = vand.u32 2147483647, %v216
    %v490 = vand.u32 2147483647, %v217
    %v491 = vsub.f32 0.0, %v489
    %v492 = vsub.f32 0.0, %v490
    %v493 = vmul.f32 %v491, 1.442695
    %v494 = vpow.pop %v493
    %v495 = vmul.f32 %v492, 1.442695
    %v496 = vpow.pop %v495
    %v497 = vadd.f32 %v494, 1.0
    %v498 = vadd.f32 %v496, 1.0
    %v499 = vlog2.pop %v497
    %v500 = vmul.f32 %v499, 0.6931472
    %v501 = vlog2.pop %v498
    %v502 = vmul.f32 %v501, 0.6931472
    %v503 = vsub.f32 %v487, %v500
    %v504 = vsub.f32 %v488, %v502
    %v505 = vadd.f32 %v503, %v483
    %v506 = vadd.f32 %v503, %v484
    %v507 = vadd.f32 %v504, %v485
    %v508 = vadd.f32 %v504, %v486
    %v509 = vsel %vm175, %v505, -inf
    %510 = vmax.xlane.f32.xlu0 %v509
    %v511 = vpop.xlane.xlu0 %510
    %v512 = vsel %vm175, %v506, -inf
    %513 = vmax.xlane.f32.xlu0 %v512
    %v514 = vpop.xlane.xlu0 %513
    %v515 = vsel %vm175, %v507, -inf
    %516 = vmax.xlane.f32.xlu0 %v515
    %v517 = vpop.xlane.xlu0 %516
    %v518 = vsel %vm175, %v508, -inf
    %519 = vmax.xlane.f32.xlu0 %v518
    %v520 = vpop.xlane.xlu0 %519
    %v521 = vsub.f32 %v505, %v511
    %v522 = vsub.f32 %v506, %v514
    %v523 = vsub.f32 %v507, %v517
    %v524 = vsub.f32 %v508, %v520
    %v525 = vmul.f32 %v521, 1.442695
    %v526 = vpow.pop %v525
    %v527 = vmul.f32 %v522, 1.442695
    %v528 = vpow.pop %v527
    %v529 = vmul.f32 %v523, 1.442695
    %v530 = vpow.pop %v529
    %v531 = vmul.f32 %v524, 1.442695
    %v532 = vpow.pop %v531
    %v533 = vsel %vm175, %v526, 0.0
    %534 = vadd.xlane.f32.xlu0 %v533
    %v535 = vpop.xlane.xlu0 %534
    %v536 = vsel %vm175, %v528, 0.0
    %537 = vadd.xlane.f32.xlu0 %v536
    %v538 = vpop.xlane.xlu0 %537
    %v539 = vsel %vm175, %v530, 0.0
    %540 = vadd.xlane.f32.xlu0 %v539
    %v541 = vpop.xlane.xlu0 %540
    %v542 = vsel %vm175, %v532, 0.0
    %543 = vadd.xlane.f32.xlu0 %v542
    %v544 = vpop.xlane.xlu0 %543
    %v545 = vrcp.pop %v535
    %v546 = vmul.f32 %v526, %v545
    %v547 = vrcp.pop %v538
    %v548 = vmul.f32 %v528, %v547
    %v549 = vrcp.pop %v541
    %v550 = vmul.f32 %v530, %v549
    %v551 = vrcp.pop %v544
    %v552 = vmul.f32 %v532, %v551
    %v553 = vmul.f32 %v150, %v546
    %v554 = vmul.f32 %v155, %v548
    %v555 = vmul.f32 %v160, %v550
    %v556 = vmul.f32 %v165, %v552
    %v557 = vsub.f32 %v150, %v553
    %v558 = vsub.f32 %v155, %v554
    %v559 = vsub.f32 %v160, %v555
    %v560 = vsub.f32 %v165, %v556
    %v561 = vmul.f32 %v119, %v553
    %v562 = vmul.f32 %v120, %v554
    %v563 = vmul.f32 %v119, %v555
    %v564 = vmul.f32 %v120, %v556
    %v565 = vsel %vm175, %v561, 0.0
    %v566 = vsel %vm175, %v562, 0.0
    %v567 = vadd.f32 %v565, %v566
    %v568 = vrot.slane %v567, 4
    %v569 = vadd.f32 %v567, %v568
    %v570 = vrot.slane %v569, 2
    %v571 = vadd.f32 %v569, %v570
    %v572 = vrot.slane %v571, 1
    %v573 = vadd.f32 %v571, %v572
    %v574 = vsel %vm175, %v563, 0.0
    %v575 = vsel %vm175, %v564, 0.0
    %v576 = vadd.f32 %v574, %v575
    %v577 = vrot.slane %v576, 4
    %v578 = vadd.f32 %v576, %v577
    %v579 = vrot.slane %v578, 2
    %v580 = vadd.f32 %v578, %v579
    %v581 = vrot.slane %v580, 1
    %v582 = vadd.f32 %v580, %v581
    %v583 = vmul.f32 %v121, %v557
    %v584 = vmul.f32 %v122, %v558
    %v585 = vmul.f32 %v121, %v559
    %v586 = vmul.f32 %v122, %v560
    %v587 = vsel %vm175, %v583, 0.0
    %v588 = vsel %vm175, %v584, 0.0
    %v589 = vadd.f32 %v587, %v588
    %v590 = vrot.slane %v589, 4
    %v591 = vadd.f32 %v589, %v590
    %v592 = vrot.slane %v591, 2
    %v593 = vadd.f32 %v591, %v592
    %v594 = vrot.slane %v593, 1
    %v595 = vadd.f32 %v593, %v594
    %v596 = vsel %vm175, %v585, 0.0
    %v597 = vsel %vm175, %v586, 0.0
    %v598 = vadd.f32 %v596, %v597
    %v599 = vrot.slane %v598, 4
    %v600 = vadd.f32 %v598, %v599
    %v601 = vrot.slane %v600, 2
    %v602 = vadd.f32 %v600, %v601
    %v603 = vrot.slane %v602, 1
    %v604 = vadd.f32 %v602, %v603
    %v605 = vsub.f32 %v573, %v595
    %v606 = vsub.f32 %v582, %v604
    %v607 = vsel %vm175, %v553, 0.0
    %v608 = vsel %vm175, %v554, 0.0
    %v609 = vadd.f32 %v607, %v608
    %v610 = vrot.slane %v609, 4
    %v611 = vadd.f32 %v609, %v610
    %v612 = vrot.slane %v611, 2
    %v613 = vadd.f32 %v611, %v612
    %v614 = vrot.slane %v613, 1
    %v615 = vadd.f32 %v613, %v614
    %v616 = vsel %vm175, %v555, 0.0
    %v617 = vsel %vm175, %v556, 0.0
    %v618 = vadd.f32 %v616, %v617
    %v619 = vrot.slane %v618, 4
    %v620 = vadd.f32 %v618, %v619
    %v621 = vrot.slane %v620, 2
    %v622 = vadd.f32 %v620, %v621
    %v623 = vrot.slane %v622, 1
    %v624 = vadd.f32 %v622, %v623
    %v625 = vadd.f32 %v615, 1e-05
    %v626 = vadd.f32 %v624, 1e-05
    %v627 = vrcp.pop %v625
    %v628 = vrcp.pop %v626
    %v631 = vsel %vm238, %v628, %v627
    %633 = vrot.lane.b32.xlu0 %v631, 8
    %v634 = vpop.permute.xlu0 %633
    %v636 = vsel %vm175, %v631, %v634
    %638 = vrot.lane.b32.xlu0 %v636, 16
    %v639 = vpop.permute.xlu0 %638
    %v641 = vsel %vm245, %v636, %v639
    %643 = vrot.lane.b32.xlu0 %v641, 32
    %v644 = vpop.permute.xlu0 %643
    %v646 = vsel %vm251, %v641, %v644
    %648 = vrot.lane.b32.xlu0 %v646, 64
    %v649 = vpop.permute.xlu0 %648
    %v651 = vsel %vm257, %v646, %v649
    %656 = vrot.lane.b32.xlu0 %v553, 8
    %v657 = vpop.permute.xlu0 %656
    %658 = vrot.lane.b32.xlu0 %v554, 8
    %v659 = vpop.permute.xlu0 %658
    %660 = vrot.lane.b32.xlu0 %v555, 8
    %v661 = vpop.permute.xlu0 %660
    %662 = vrot.lane.b32.xlu0 %v556, 8
    %v663 = vpop.permute.xlu0 %662
    %v668 = vsel %vm175, %v553, %v657
    %v669 = vsel %vm175, %v554, %v659
    %v670 = vsel %vm175, %v555, %v661
    %v671 = vsel %vm175, %v556, %v663
    %676 = vrot.lane.b32.xlu0 %v668, 16
    %v677 = vpop.permute.xlu0 %676
    %678 = vrot.lane.b32.xlu0 %v669, 16
    %v679 = vpop.permute.xlu0 %678
    %680 = vrot.lane.b32.xlu0 %v670, 16
    %v681 = vpop.permute.xlu0 %680
    %682 = vrot.lane.b32.xlu0 %v671, 16
    %v683 = vpop.permute.xlu0 %682
    %v688 = vsel %vm245, %v668, %v677
    %v689 = vsel %vm245, %v669, %v679
    %v690 = vsel %vm245, %v670, %v681
    %v691 = vsel %vm245, %v671, %v683
    %696 = vrot.lane.b32.xlu0 %v688, 32
    %v697 = vpop.permute.xlu0 %696
    %698 = vrot.lane.b32.xlu0 %v689, 32
    %v699 = vpop.permute.xlu0 %698
    %700 = vrot.lane.b32.xlu0 %v690, 32
    %v701 = vpop.permute.xlu0 %700
    %702 = vrot.lane.b32.xlu0 %v691, 32
    %v703 = vpop.permute.xlu0 %702
    %v708 = vsel %vm251, %v688, %v697
    %v709 = vsel %vm251, %v689, %v699
    %v710 = vsel %vm251, %v690, %v701
    %v711 = vsel %vm251, %v691, %v703
    %716 = vrot.lane.b32.xlu0 %v708, 64
    %v717 = vpop.permute.xlu0 %716
    %718 = vrot.lane.b32.xlu0 %v709, 64
    %v719 = vpop.permute.xlu0 %718
    %720 = vrot.lane.b32.xlu0 %v710, 64
    %v721 = vpop.permute.xlu0 %720
    %722 = vrot.lane.b32.xlu0 %v711, 64
    %v723 = vpop.permute.xlu0 %722
    %v728 = vsel %vm257, %v708, %v717
    %v729 = vsel %vm257, %v709, %v719
    %v730 = vsel %vm257, %v710, %v721
    %v731 = vsel %vm257, %v711, %v723
    %v732 = vmul.f32 %v728, %v115
    %v733 = vmul.f32 %v729, %v116
    %v734 = vmul.f32 %v730, %v117
    %v735 = vmul.f32 %v731, %v118
    %v736 = vadd.f32 %v732, %v733
    %v737 = vrot.slane %v736, 4
    %v738 = vadd.f32 %v736, %v737
    %v739 = vrot.slane %v738, 2
    %v740 = vadd.f32 %v738, %v739
    %v741 = vrot.slane %v740, 1
    %v742 = vadd.f32 %v740, %v741
    %v743 = vadd.f32 %v734, %v735
    %v744 = vrot.slane %v743, 4
    %v745 = vadd.f32 %v743, %v744
    %v746 = vrot.slane %v745, 2
    %v747 = vadd.f32 %v745, %v746
    %v748 = vrot.slane %v747, 1
    %v749 = vadd.f32 %v747, %v748
    %v751 = vrot.slane %v651, 1
    %v754 = vmul.f32 %v742, %v651
    %v755 = vmul.f32 %v749, %v751
    %v756 = vlaneseq
    %v757 = vshrl.u32 %v756, 7
    %v758 = vsub.s32 0, %v757
    %v759 = vrot.slane %v754, %v758
    %v760 = vlaneseq
    %v761 = vshrl.u32 %v760, 7
    %v762 = vsub.s32 0, %v761
    %v763 = vrot.slane %v755, %v762
    %v764 = vsub.f32 %v115, %v759
    %v765 = vsub.f32 %v116, %v759
    %v766 = vsub.f32 %v117, %v763
    %v767 = vsub.f32 %v118, %v763
    %v768 = vmul.f32 %v764, %v764
    %v769 = vmul.f32 %v765, %v765
    %v770 = vmul.f32 %v766, %v766
    %v771 = vmul.f32 %v767, %v767
    %776 = vrot.lane.b32.xlu0 %v768, 64
    %v777 = vpop.permute.xlu0 %776
    %778 = vrot.lane.b32.xlu0 %v769, 64
    %v779 = vpop.permute.xlu0 %778
    %780 = vrot.lane.b32.xlu0 %v770, 64
    %v781 = vpop.permute.xlu0 %780
    %782 = vrot.lane.b32.xlu0 %v771, 64
    %v783 = vpop.permute.xlu0 %782
    %v788 = vadd.f32 %v768, %v777
    %v789 = vadd.f32 %v769, %v779
    %v790 = vadd.f32 %v770, %v781
    %v791 = vadd.f32 %v771, %v783
    %796 = vrot.lane.b32.xlu0 %v788, 96
    %v797 = vpop.permute.xlu0 %796
    %798 = vrot.lane.b32.xlu0 %v789, 96
    %v799 = vpop.permute.xlu0 %798
    %800 = vrot.lane.b32.xlu0 %v790, 96
    %v801 = vpop.permute.xlu0 %800
    %802 = vrot.lane.b32.xlu0 %v791, 96
    %v803 = vpop.permute.xlu0 %802
    %v808 = vadd.f32 %v788, %v797
    %v809 = vadd.f32 %v789, %v799
    %v810 = vadd.f32 %v790, %v801
    %v811 = vadd.f32 %v791, %v803
    %816 = vrot.lane.b32.xlu0 %v808, 112
    %v817 = vpop.permute.xlu0 %816
    %818 = vrot.lane.b32.xlu0 %v809, 112
    %v819 = vpop.permute.xlu0 %818
    %820 = vrot.lane.b32.xlu0 %v810, 112
    %v821 = vpop.permute.xlu0 %820
    %822 = vrot.lane.b32.xlu0 %v811, 112
    %v823 = vpop.permute.xlu0 %822
    %v828 = vadd.f32 %v808, %v817
    %v829 = vadd.f32 %v809, %v819
    %v830 = vadd.f32 %v810, %v821
    %v831 = vadd.f32 %v811, %v823
    %836 = vrot.lane.b32.xlu0 %v828, 120
    %v837 = vpop.permute.xlu0 %836
    %838 = vrot.lane.b32.xlu0 %v829, 120
    %v839 = vpop.permute.xlu0 %838
    %840 = vrot.lane.b32.xlu0 %v830, 120
    %v841 = vpop.permute.xlu0 %840
    %842 = vrot.lane.b32.xlu0 %v831, 120
    %v843 = vpop.permute.xlu0 %842
    %v848 = vadd.f32 %v828, %v837
    %v849 = vadd.f32 %v829, %v839
    %v850 = vadd.f32 %v830, %v841
    %v851 = vadd.f32 %v831, %v843
    %v852 = vsub.f32 0.0, %v848
    %v853 = vsub.f32 0.0, %v849
    %v854 = vsub.f32 0.0, %v850
    %v855 = vsub.f32 0.0, %v851
    %v856 = vsel %vm175, %v852, -inf
    %857 = vmax.xlane.f32.xlu0 %v856
    %v858 = vpop.xlane.xlu0 %857
    %v859 = vsel %vm175, %v853, -inf
    %860 = vmax.xlane.f32.xlu0 %v859
    %v861 = vpop.xlane.xlu0 %860
    %v862 = vsel %vm175, %v854, -inf
    %863 = vmax.xlane.f32.xlu0 %v862
    %v864 = vpop.xlane.xlu0 %863
    %v865 = vsel %vm175, %v855, -inf
    %866 = vmax.xlane.f32.xlu0 %v865
    %v867 = vpop.xlane.xlu0 %866
    %v868 = vsub.f32 %v852, %v858
    %v869 = vsub.f32 %v853, %v861
    %v870 = vsub.f32 %v854, %v864
    %v871 = vsub.f32 %v855, %v867
    %v872 = vmul.f32 %v868, 1.442695
    %v873 = vpow.pop %v872
    %v874 = vmul.f32 %v869, 1.442695
    %v875 = vpow.pop %v874
    %v876 = vmul.f32 %v870, 1.442695
    %v877 = vpow.pop %v876
    %v878 = vmul.f32 %v871, 1.442695
    %v879 = vpow.pop %v878
    %v880 = vsel %vm175, %v873, 0.0
    %881 = vadd.xlane.f32.xlu0 %v880
    %v882 = vpop.xlane.xlu0 %881
    %v883 = vsel %vm175, %v875, 0.0
    %884 = vadd.xlane.f32.xlu0 %v883
    %v885 = vpop.xlane.xlu0 %884
    %v886 = vsel %vm175, %v877, 0.0
    %887 = vadd.xlane.f32.xlu0 %v886
    %v888 = vpop.xlane.xlu0 %887
    %v889 = vsel %vm175, %v879, 0.0
    %890 = vadd.xlane.f32.xlu0 %v889
    %v891 = vpop.xlane.xlu0 %890
    %v892 = vlog2.pop %v882
    %v893 = vmul.f32 %v892, 0.6931472
    %v894 = vlog2.pop %v885
    %v895 = vmul.f32 %v894, 0.6931472
    %v896 = vlog2.pop %v888
    %v897 = vmul.f32 %v896, 0.6931472
    %v898 = vlog2.pop %v891
    %v899 = vmul.f32 %v898, 0.6931472
    %v900 = vsub.f32 %v868, %v893
    %v901 = vsub.f32 %v869, %v895
    %v902 = vsub.f32 %v870, %v897
    %v903 = vsub.f32 %v871, %v899
    %v904 = vmin.f32 %v605, 0.0
    %v905 = vmin.f32 %v606, 0.0
    %v906 = vand.u32 2147483647, %v605
    %v907 = vand.u32 2147483647, %v606
    %v908 = vsub.f32 0.0, %v906
    %v909 = vsub.f32 0.0, %v907
    %v910 = vmul.f32 %v908, 1.442695
    %v911 = vpow.pop %v910
    %v912 = vmul.f32 %v909, 1.442695
    %v913 = vpow.pop %v912
    %v914 = vadd.f32 %v911, 1.0
    %v915 = vadd.f32 %v913, 1.0
    %v916 = vlog2.pop %v914
    %v917 = vmul.f32 %v916, 0.6931472
    %v918 = vlog2.pop %v915
    %v919 = vmul.f32 %v918, 0.6931472
    %v920 = vsub.f32 %v904, %v917
    %v921 = vsub.f32 %v905, %v919
    %v922 = vadd.f32 %v920, %v900
    %v923 = vadd.f32 %v920, %v901
    %v924 = vadd.f32 %v921, %v902
    %v925 = vadd.f32 %v921, %v903
    %v926 = vsel %vm175, %v922, -inf
    %927 = vmax.xlane.f32.xlu0 %v926
    %v928 = vpop.xlane.xlu0 %927
    %v929 = vsel %vm175, %v923, -inf
    %930 = vmax.xlane.f32.xlu0 %v929
    %v931 = vpop.xlane.xlu0 %930
    %v932 = vsel %vm175, %v924, -inf
    %933 = vmax.xlane.f32.xlu0 %v932
    %v934 = vpop.xlane.xlu0 %933
    %v935 = vsel %vm175, %v925, -inf
    %936 = vmax.xlane.f32.xlu0 %v935
    %v937 = vpop.xlane.xlu0 %936
    %v938 = vsub.f32 %v922, %v928
    %v939 = vsub.f32 %v923, %v931
    %v940 = vsub.f32 %v924, %v934
    %v941 = vsub.f32 %v925, %v937
    %v942 = vmul.f32 %v938, 1.442695
    %v943 = vpow.pop %v942
    %v944 = vmul.f32 %v939, 1.442695
    %v945 = vpow.pop %v944
    %v946 = vmul.f32 %v940, 1.442695
    %v947 = vpow.pop %v946
    %v948 = vmul.f32 %v941, 1.442695
    %v949 = vpow.pop %v948
    %v950 = vsel %vm175, %v943, 0.0
    %951 = vadd.xlane.f32.xlu0 %v950
    %v952 = vpop.xlane.xlu0 %951
    %v953 = vsel %vm175, %v945, 0.0
    %954 = vadd.xlane.f32.xlu0 %v953
    %v955 = vpop.xlane.xlu0 %954
    %v956 = vsel %vm175, %v947, 0.0
    %957 = vadd.xlane.f32.xlu0 %v956
    %v958 = vpop.xlane.xlu0 %957
    %v959 = vsel %vm175, %v949, 0.0
    %960 = vadd.xlane.f32.xlu0 %v959
    %v961 = vpop.xlane.xlu0 %960
    %v962 = vrcp.pop %v952
    %v963 = vmul.f32 %v943, %v962
    %v964 = vrcp.pop %v955
    %v965 = vmul.f32 %v945, %v964
    %v966 = vrcp.pop %v958
    %v967 = vmul.f32 %v947, %v966
    %v968 = vrcp.pop %v961
    %v969 = vmul.f32 %v949, %v968
    %v970 = vmul.f32 %v150, %v963
    %v971 = vmul.f32 %v155, %v965
    %v972 = vmul.f32 %v160, %v967
    %v973 = vmul.f32 %v165, %v969
    %v974 = vsub.f32 %v150, %v970
    %v975 = vsub.f32 %v155, %v971
    %v976 = vsub.f32 %v160, %v972
    %v977 = vsub.f32 %v165, %v973
    %v978 = vmul.f32 %v119, %v970
    %v979 = vmul.f32 %v120, %v971
    %v980 = vmul.f32 %v119, %v972
    %v981 = vmul.f32 %v120, %v973
    %v982 = vsel %vm175, %v978, 0.0
    %v983 = vsel %vm175, %v979, 0.0
    %v984 = vadd.f32 %v982, %v983
    %v985 = vrot.slane %v984, 4
    %v986 = vadd.f32 %v984, %v985
    %v987 = vrot.slane %v986, 2
    %v988 = vadd.f32 %v986, %v987
    %v989 = vrot.slane %v988, 1
    %v990 = vadd.f32 %v988, %v989
    %v991 = vsel %vm175, %v980, 0.0
    %v992 = vsel %vm175, %v981, 0.0
    %v993 = vadd.f32 %v991, %v992
    %v994 = vrot.slane %v993, 4
    %v995 = vadd.f32 %v993, %v994
    %v996 = vrot.slane %v995, 2
    %v997 = vadd.f32 %v995, %v996
    %v998 = vrot.slane %v997, 1
    %v999 = vadd.f32 %v997, %v998
    %v1000 = vmul.f32 %v121, %v974
    %v1001 = vmul.f32 %v122, %v975
    %v1002 = vmul.f32 %v121, %v976
    %v1003 = vmul.f32 %v122, %v977
    %v1004 = vsel %vm175, %v1000, 0.0
    %v1005 = vsel %vm175, %v1001, 0.0
    %v1006 = vadd.f32 %v1004, %v1005
    %v1007 = vrot.slane %v1006, 4
    %v1008 = vadd.f32 %v1006, %v1007
    %v1009 = vrot.slane %v1008, 2
    %v1010 = vadd.f32 %v1008, %v1009
    %v1011 = vrot.slane %v1010, 1
    %v1012 = vadd.f32 %v1010, %v1011
    %v1013 = vsel %vm175, %v1002, 0.0
    %v1014 = vsel %vm175, %v1003, 0.0
    %v1015 = vadd.f32 %v1013, %v1014
    %v1016 = vrot.slane %v1015, 4
    %v1017 = vadd.f32 %v1015, %v1016
    %v1018 = vrot.slane %v1017, 2
    %v1019 = vadd.f32 %v1017, %v1018
    %v1020 = vrot.slane %v1019, 1
    %v1021 = vadd.f32 %v1019, %v1020
    %v1022 = vsub.f32 %v990, %v1012
    %v1023 = vsub.f32 %v999, %v1021
    %v1024 = vsel %vm175, %v970, 0.0
    %v1025 = vsel %vm175, %v971, 0.0
    %v1026 = vadd.f32 %v1024, %v1025
    %v1027 = vrot.slane %v1026, 4
    %v1028 = vadd.f32 %v1026, %v1027
    %v1029 = vrot.slane %v1028, 2
    %v1030 = vadd.f32 %v1028, %v1029
    %v1031 = vrot.slane %v1030, 1
    %v1032 = vadd.f32 %v1030, %v1031
    %v1033 = vsel %vm175, %v972, 0.0
    %v1034 = vsel %vm175, %v973, 0.0
    %v1035 = vadd.f32 %v1033, %v1034
    %v1036 = vrot.slane %v1035, 4
    %v1037 = vadd.f32 %v1035, %v1036
    %v1038 = vrot.slane %v1037, 2
    %v1039 = vadd.f32 %v1037, %v1038
    %v1040 = vrot.slane %v1039, 1
    %v1041 = vadd.f32 %v1039, %v1040
    %v1042 = vadd.f32 %v1032, 1e-05
    %v1043 = vadd.f32 %v1041, 1e-05
    %v1044 = vrcp.pop %v1042
    %v1045 = vrcp.pop %v1043
    %v1048 = vsel %vm238, %v1045, %v1044
    %1050 = vrot.lane.b32.xlu0 %v1048, 8
    %v1051 = vpop.permute.xlu0 %1050
    %v1053 = vsel %vm175, %v1048, %v1051
    %1055 = vrot.lane.b32.xlu0 %v1053, 16
    %v1056 = vpop.permute.xlu0 %1055
    %v1058 = vsel %vm245, %v1053, %v1056
    %1060 = vrot.lane.b32.xlu0 %v1058, 32
    %v1061 = vpop.permute.xlu0 %1060
    %v1063 = vsel %vm251, %v1058, %v1061
    %1065 = vrot.lane.b32.xlu0 %v1063, 64
    %v1066 = vpop.permute.xlu0 %1065
    %v1068 = vsel %vm257, %v1063, %v1066
    %1073 = vrot.lane.b32.xlu0 %v970, 8
    %v1074 = vpop.permute.xlu0 %1073
    %1075 = vrot.lane.b32.xlu0 %v971, 8
    %v1076 = vpop.permute.xlu0 %1075
    %1077 = vrot.lane.b32.xlu0 %v972, 8
    %v1078 = vpop.permute.xlu0 %1077
    %1079 = vrot.lane.b32.xlu0 %v973, 8
    %v1080 = vpop.permute.xlu0 %1079
    %v1085 = vsel %vm175, %v970, %v1074
    %v1086 = vsel %vm175, %v971, %v1076
    %v1087 = vsel %vm175, %v972, %v1078
    %v1088 = vsel %vm175, %v973, %v1080
    %1093 = vrot.lane.b32.xlu0 %v1085, 16
    %v1094 = vpop.permute.xlu0 %1093
    %1095 = vrot.lane.b32.xlu0 %v1086, 16
    %v1096 = vpop.permute.xlu0 %1095
    %1097 = vrot.lane.b32.xlu0 %v1087, 16
    %v1098 = vpop.permute.xlu0 %1097
    %1099 = vrot.lane.b32.xlu0 %v1088, 16
    %v1100 = vpop.permute.xlu0 %1099
    %v1105 = vsel %vm245, %v1085, %v1094
    %v1106 = vsel %vm245, %v1086, %v1096
    %v1107 = vsel %vm245, %v1087, %v1098
    %v1108 = vsel %vm245, %v1088, %v1100
    %1113 = vrot.lane.b32.xlu0 %v1105, 32
    %v1114 = vpop.permute.xlu0 %1113
    %1115 = vrot.lane.b32.xlu0 %v1106, 32
    %v1116 = vpop.permute.xlu0 %1115
    %1117 = vrot.lane.b32.xlu0 %v1107, 32
    %v1118 = vpop.permute.xlu0 %1117
    %1119 = vrot.lane.b32.xlu0 %v1108, 32
    %v1120 = vpop.permute.xlu0 %1119
    %v1125 = vsel %vm251, %v1105, %v1114
    %v1126 = vsel %vm251, %v1106, %v1116
    %v1127 = vsel %vm251, %v1107, %v1118
    %v1128 = vsel %vm251, %v1108, %v1120
    %1133 = vrot.lane.b32.xlu0 %v1125, 64
    %v1134 = vpop.permute.xlu0 %1133
    %1135 = vrot.lane.b32.xlu0 %v1126, 64
    %v1136 = vpop.permute.xlu0 %1135
    %1137 = vrot.lane.b32.xlu0 %v1127, 64
    %v1138 = vpop.permute.xlu0 %1137
    %1139 = vrot.lane.b32.xlu0 %v1128, 64
    %v1140 = vpop.permute.xlu0 %1139
    %v1145 = vsel %vm257, %v1125, %v1134
    %v1146 = vsel %vm257, %v1126, %v1136
    %v1147 = vsel %vm257, %v1127, %v1138
    %v1148 = vsel %vm257, %v1128, %v1140
    %v1149 = vmul.f32 %v1145, %v115
    %v1150 = vmul.f32 %v1146, %v116
    %v1151 = vmul.f32 %v1147, %v117
    %v1152 = vmul.f32 %v1148, %v118
    %v1153 = vadd.f32 %v1149, %v1150
    %v1154 = vrot.slane %v1153, 4
    %v1155 = vadd.f32 %v1153, %v1154
    %v1156 = vrot.slane %v1155, 2
    %v1157 = vadd.f32 %v1155, %v1156
    %v1158 = vrot.slane %v1157, 1
    %v1159 = vadd.f32 %v1157, %v1158
    %v1160 = vadd.f32 %v1151, %v1152
    %v1161 = vrot.slane %v1160, 4
    %v1162 = vadd.f32 %v1160, %v1161
    %v1163 = vrot.slane %v1162, 2
    %v1164 = vadd.f32 %v1162, %v1163
    %v1165 = vrot.slane %v1164, 1
    %v1166 = vadd.f32 %v1164, %v1165
    %v1168 = vrot.slane %v1068, 1
    %v1171 = vmul.f32 %v1159, %v1068
    %v1172 = vmul.f32 %v1166, %v1168
    %v1173 = vlaneseq
    %v1174 = vshrl.u32 %v1173, 7
    %v1175 = vsub.s32 0, %v1174
    %v1176 = vrot.slane %v1171, %v1175
    %v1177 = vlaneseq
    %v1178 = vshrl.u32 %v1177, 7
    %v1179 = vsub.s32 0, %v1178
    %v1180 = vrot.slane %v1172, %v1179
    %v1181 = vsub.f32 %v115, %v1176
    %v1182 = vsub.f32 %v116, %v1176
    %v1183 = vsub.f32 %v117, %v1180
    %v1184 = vsub.f32 %v118, %v1180
    %v1185 = vmul.f32 %v1181, %v1181
    %v1186 = vmul.f32 %v1182, %v1182
    %v1187 = vmul.f32 %v1183, %v1183
    %v1188 = vmul.f32 %v1184, %v1184
    %v1189 = vmul.f32 %v1145, %v1185
    %v1190 = vmul.f32 %v1146, %v1186
    %v1191 = vmul.f32 %v1147, %v1187
    %v1192 = vmul.f32 %v1148, %v1188
    %v1193 = vadd.f32 %v1189, %v1190
    %v1194 = vrot.slane %v1193, 4
    %v1195 = vadd.f32 %v1193, %v1194
    %v1196 = vrot.slane %v1195, 2
    %v1197 = vadd.f32 %v1195, %v1196
    %v1198 = vrot.slane %v1197, 1
    %v1199 = vadd.f32 %v1197, %v1198
    %v1200 = vadd.f32 %v1191, %v1192
    %v1201 = vrot.slane %v1200, 4
    %v1202 = vadd.f32 %v1200, %v1201
    %v1203 = vrot.slane %v1202, 2
    %v1204 = vadd.f32 %v1202, %v1203
    %v1205 = vrot.slane %v1204, 1
    %v1206 = vadd.f32 %v1204, %v1205
    %v1207 = vmul.f32 %v1199, %v1068
    %v1208 = vmul.f32 %v1206, %v1168
    %v1209 = vadd.f32 %v1207, 1e-05
    %v1210 = vadd.f32 %v1208, 1e-05
    %v1213 = vsel %vm238, %v1023, %v1022
    %vm1215 = vcmask 58368
    %1216 = vst.msk [vmem:[#allocation2] sm:$0x3] %vm1215, %v1213
    %v1219 = vrot.slane %v1172, 7
    %v1220 = vsel %vm238, %v1219, %v1171
    %1222 = vst [vmem:[%s7] sm:$0x3] %v1220
    %v1225 = vrot.slane %v1210, 7
    %v1226 = vsel %vm238, %v1225, %v1209
    %1228 = vst [vmem:[%s8] sm:$0x3] %v1226
    // Predicated region
    $region26: #{routing_forward.1} parent=1 // pred_check
      _
    $region27: #{routing_forward.1} parent=1 // pred_check_branch
      %1230 = sbr.rel (0) target = $region29
    $region28: #{routing_forward.1} parent=1 // pred_region
      %s1232 = ssub.s32 32, 32
      %1233 = vsyncadd [#allocation3], %s1232
      %s1235 = sshll.u32 [#allocation2], 4
      %s1236 = int_to_ptr.vmem [resolvable:$true] %s1235
      %1238 = dma.vmem_to_hbm [thread:$0]  %s1236, 32, %s6, [#allocation3]
    $region29: #{routing_forward.1} parent=1 // pred_fallthru
      _
    // Predicated region
    $region30: #{routing_forward.1} parent=1 // pred_check
      _
    $region31: #{routing_forward.1} parent=1 // pred_check_branch
      %1240 = sbr.rel (0) target = $region33
    $region32: #{routing_forward.1} parent=1 // pred_region
      _
    $region33: #{routing_forward.1} parent=1 // pred_fallthru
      _
    // Predicated region
    $region34: #{routing_forward.1} parent=1 // pred_check
      _
    $region35: #{routing_forward.1} parent=1 // pred_check_branch
      %1242 = sbr.rel (0) target = $region37
    $region36: #{routing_forward.1} parent=1 // pred_region
      _
    $region37: #{routing_forward.1} parent=1 // pred_fallthru
      _
    // Predicated region
    $region38: #{routing_forward.1} parent=1 // pred_check
      _
    $region39: #{routing_forward.1} parent=1 // pred_check_branch
      %1244 = sbr.rel (0) target = $region41
    $region40: #{routing_forward.1} parent=1 // pred_region
      %1245 = dma.done [#allocation3], 32
    $region41: #{routing_forward.1} parent=1 // pred_fallthru
      _
    // Predicated region
    $region42: #{routing_forward.1} parent=1 // pred_check
      _
    $region43: #{routing_forward.1} parent=1 // pred_check_branch
      %1247 = sbr.rel (0) target = $region45
    $region44: #{routing_forward.1} parent=1 // pred_region
      _
    $region45: #{routing_forward.1} parent=1 // pred_fallthru
      _
    // Predicated region
    $region46: #{routing_forward.1} parent=1 // pred_check
      _
    $region47: #{routing_forward.1} parent=1 // pred_check_branch
      %1249 = sbr.rel (0) target = $region49
    $region48: #{routing_forward.1} parent=1 // pred_region
      _
    $region49: #{routing_forward.1} parent=1 // pred_fallthru
      _
    %1250 = vsyncpa [#allocation3], 1

</llo_original>
